<compile_context>
chip_gen: v6e
topology: v6e:2x2x1
jax: 0.10.0
libtpu: 0.0.40
codegen_flags: <defaults>
</compile_context>

<pallas_src>
import jax
import jax.numpy as jnp
from jax import lax
from jax.experimental import pallas as pl
from jax.experimental.pallas import tpu as pltpu

MAX_WAVELET_SCALE = 4                       # J
RADIAL_CUTOFF = 0.52
J = MAX_WAVELET_SCALE
M = J * (J - 1) // 2                        # number of second-order (i, a) pairs
NUM_STATS = 4                               # mean, var, skew, kurtosis
OUT_ROWS = NUM_STATS * (1 + J + M)          # 44


def _stats(x):
    """Moments over axis 0 of x:(N,F) -> (mean, var, skew, kurt), each (1,F).

    var matches torch.var(unbiased=False); skew/kurtosis match the scipy
    bias=False (Fisher) formulas used by the reference torch helpers.
    """
    n = float(x.shape[0])
    mean = jnp.mean(x, axis=0, keepdims=True)
    d = x - mean
    d2 = d * d
    d3 = d2 * d
    d4 = d2 * d2
    m2 = jnp.mean(d2, axis=0, keepdims=True)
    m3 = jnp.mean(d3, axis=0, keepdims=True)
    m4 = jnp.mean(d4, axis=0, keepdims=True)
    var = m2                                                    # unbiased=False
    g1 = m3 / (m2 * jnp.sqrt(m2))
    skew = g1 * jnp.sqrt(n * (n - 1.0)) / (n - 2.0)             # scipy bias=False
    g2 = m4 / (m2 * m2) - 3.0
    kurt = ((n + 1.0) * g2 + 6.0) * (n - 1.0) / ((n - 2.0) * (n - 3.0))
    return mean, var, skew, kurt


def gsg_kernel(pos_ref, sig_ref, out_ref):
    pos = pos_ref[...].astype(jnp.float32)          # (N, 3)
    sig = sig_ref[...].astype(jnp.float32)          # (N, F)
    n = pos.shape[0]
    f = sig.shape[1]

    # ---- adjacency: ||p_i - p_j||^2 < cutoff^2 ------------------------------
    gram = lax.dot_general(pos, pos, (((1,), (1,)), ((), ())),
                           preferred_element_type=jnp.float32)          # (N, N)
    sq_col = jnp.sum(pos * pos, axis=1, keepdims=True)                  # (N, 1) ||p_i||^2
    # Row-broadcast of ||p_j||^2 via a rank-1 outer product (no (N,1) transpose).
    ones_col = jnp.ones((n, 1), jnp.float32)
    sq_row = lax.dot_general(ones_col, sq_col, (((1,), (1,)), ((), ())),
                             preferred_element_type=jnp.float32)        # (N, N) ||p_j||^2
    d2 = sq_col + sq_row - 2.0 * gram
    adj = (d2 < RADIAL_CUTOFF * RADIAL_CUTOFF).astype(jnp.float32)

    # ---- lazy random walk:  P = 1/2 (I + A / deg_col) -----------------------
    deg = jnp.sum(adj, axis=0, keepdims=True)                           # column degrees
    row = lax.broadcasted_iota(jnp.int32, (n, n), 0)
    col = lax.broadcasted_iota(jnp.int32, (n, n), 1)
    eye = (row == col).astype(jnp.float32)
    prob = 0.5 * (eye + adj / deg)

    # ---- zero-order stats ---------------------------------------------------
    zero_stats = _stats(sig)

    # ---- fused power / wavelet / feature loop -------------------------------
    # At step j (only P^(2^j) and P^(2^(j+1)) live):
    #   W_j = P^(2^j) - P^(2^(j+1))
    #   res = |W_j @ [sig | ws_0 | ... | ws_{j-1}]|   (one wide, lane-dense matmul)
    # res[:, :F]            -> ws_j = |W_j @ sig|            (first order)
    # res[:, (a+1)F:(a+2)F] -> |W_j @ |W_a @ sig||            (second order, i=j)
    p_cur = prob
    rhs = sig                          # grows to (N, (j+1)*F) as ws blocks append
    first_stats = []                   # per-j (mean, var, skew, kurt)
    second_stats = []                  # per-(i, a) in torch concatenation order
    for j in range(J):
        p_next = jnp.dot(p_cur, p_cur, preferred_element_type=jnp.float32)
        w_j = p_cur - p_next
        res = jnp.abs(jnp.dot(w_j, rhs, preferred_element_type=jnp.float32))
        ws_j = res[:, :f]
        first_stats.append(_stats(ws_j))
        for a in range(j):
            second_stats.append(_stats(res[:, (a + 1) * f:(a + 2) * f]))
        rhs = jnp.concatenate([rhs, ws_j], axis=1)
        p_cur = p_next

    # ---- assemble output rows (stat-major inside each block, like torch) ----
    rows = list(zero_stats)                                             # 4 rows
    for s_idx in range(NUM_STATS):
        for jj in range(J):
            rows.append(first_stats[jj][s_idx])                         # 4*J rows
    for s_idx in range(NUM_STATS):
        for m in range(M):
            rows.append(second_stats[m][s_idx])                         # 4*M rows
    out_ref[...] = jnp.concatenate(rows, axis=0)                        # (44, F)


def gsg_forward(positions, signals):
    """positions: (N, 3) f32, signals: (N, F) f32 -> (44*F, 1) f32."""
    n, f = signals.shape
    # Post-fusion working set: ~4 live NxN f32 buffers + a few NxF / Nx(J*F)
    # blocks; size the scoped VMEM limit with ~2x headroom, capped well under
    # the smallest physical VMEM (64 MiB on v7x).
    nn_bytes = 4 * n * n
    nf_bytes = 4 * n * f
    vmem_bytes = int(min(64 * 2**20,
                         max(32 * 2**20,
                             2 * (4 * nn_bytes + (J + 2) * nf_bytes) + (1 << 20))))
    out = pl.pallas_call(
        gsg_kernel,
        out_shape=jax.ShapeDtypeStruct((OUT_ROWS, f), jnp.float32),
        grid=(1,),
        in_specs=[
            pl.BlockSpec(positions.shape, lambda i: (0, 0)),
            pl.BlockSpec(signals.shape, lambda i: (0, 0)),
        ],
        out_specs=pl.BlockSpec((OUT_ROWS, f), lambda i: (0, 0)),
        compiler_params=pltpu.CompilerParams(
            dimension_semantics=("arbitrary",),
            vmem_limit_bytes=vmem_bytes),
    )(positions, signals)
    # Row-major flatten of the (44, F) slab matches
    # torch.cat([stack(zero), stack(first), stack(second)], dim=0).reshape(-1, 1)
    return out.reshape(-1, 1)


if __name__ == "__main__":
    key = jax.random.PRNGKey(0)
    kp, ks = jax.random.split(key)
    N, F = 16, 8
    # positions in a 0.6-sized cube so the 0.52 radial cutoff gives a mixed,
    # non-trivial adjacency matrix.
    positions = jax.random.uniform(kp, (N, 3), dtype=jnp.float32) * 0.6
    signals = jax.random.normal(ks, (N, F), dtype=jnp.float32)

    feats = jax.block_until_ready(gsg_forward(positions, signals))

    assert feats.shape == (OUT_ROWS * F, 1), feats.shape
    assert bool(jnp.all(jnp.isfinite(feats)))
    print("KERNEL_OK")
</pallas_src>

<mosaic_0001>
module attributes {stable_mosaic.version = 11 : i64} {
  func.func @gsg_kernel(%arg0: i32, %arg1: memref<16x3xf32, #tpu.memory_space<vmem>>, %arg2: memref<16x8xf32, #tpu.memory_space<vmem>>, %arg3: memref<44x8xf32, #tpu.memory_space<vmem>>) attributes {dimension_semantics = [#tpu.dimension_semantics<arbitrary>], iteration_bounds = array<i64: 1>, scalar_prefetch = 0 : i64, scratch_operands = 0 : i64, tpu.core_type = #tpu.core_type<tc>, window_params = [{pipeline_mode = #tpu.pipeline_mode<synchronous>, transform_indices = @transform_0, window_bounds = array<i64: 16, 3>}, {pipeline_mode = #tpu.pipeline_mode<synchronous>, transform_indices = @transform_1, window_bounds = array<i64: 16, 8>}, {pipeline_mode = #tpu.pipeline_mode<synchronous>, transform_indices = @transform_2, window_bounds = array<i64: 44, 8>}]} {
    %c0 = arith.constant 0 : index
    %c0_0 = arith.constant 0 : index
    %0 = vector.load %arg1[%c0, %c0_0] : memref<16x3xf32, #tpu.memory_space<vmem>>, vector<16x3xf32>
    %c0_1 = arith.constant 0 : index
    %c0_2 = arith.constant 0 : index
    %1 = vector.load %arg2[%c0_1, %c0_2] : memref<16x8xf32, #tpu.memory_space<vmem>>, vector<16x8xf32>
    %cst = arith.constant dense<0.000000e+00> : vector<16x16xf32>
    %2 = tpu.matmul %0, %0, %cst {dimension_numbers = #tpu.dot_dimension_numbers<[1], [1], [0], [0], [0, 0, 1, 0], [], []>} : vector<16x3xf32>, vector<16x3xf32>, vector<16x16xf32> -> vector<16x16xf32>
    %3 = arith.mulf %0, %0 : vector<16x3xf32>
    %cst_3 = arith.constant dense<0.000000e+00> : vector<16xf32>
    %4 = vector.multi_reduction <add>, %3, %cst_3 [1] : vector<16x3xf32> to vector<16xf32>
    %5 = vector.shape_cast %4 : vector<16xf32> to vector<16x1xf32>
    %cst_4 = arith.constant 1.000000e+00 : f32
    %6 = vector.broadcast %cst_4 : f32 to vector<16x1xf32>
    %cst_5 = arith.constant dense<0.000000e+00> : vector<16x16xf32>
    %7 = tpu.matmul %6, %5, %cst_5 {dimension_numbers = #tpu.dot_dimension_numbers<[1], [1], [0], [0], [0, 0, 1, 0], [], []>} : vector<16x1xf32>, vector<16x1xf32>, vector<16x16xf32> -> vector<16x16xf32>
    %8 = vector.broadcast %5 : vector<16x1xf32> to vector<16x16xf32>
    %9 = arith.addf %8, %7 : vector<16x16xf32>
    %cst_6 = arith.constant 2.000000e+00 : f32
    %10 = vector.broadcast %cst_6 : f32 to vector<16x16xf32>
    %11 = arith.mulf %10, %2 : vector<16x16xf32>
    %12 = arith.subf %9, %11 : vector<16x16xf32>
    %cst_7 = arith.constant 2.704000e-01 : f32
    %13 = vector.broadcast %cst_7 : f32 to vector<16x16xf32>
    %14 = arith.cmpf olt, %12, %13 : vector<16x16xf32>
    %15 = arith.extui %14 : vector<16x16xi1> to vector<16x16xi32>
    %16 = arith.sitofp %15 : vector<16x16xi32> to vector<16x16xf32>
    %cst_8 = arith.constant dense<0.000000e+00> : vector<16xf32>
    %17 = vector.multi_reduction <add>, %16, %cst_8 [0] : vector<16x16xf32> to vector<16xf32>
    %18 = vector.shape_cast %17 : vector<16xf32> to vector<1x16xf32>
    %19 = tpu.iota {dimensions = array<i32: 0>} : vector<16x16xi32>
    %20 = tpu.iota {dimensions = array<i32: 1>} : vector<16x16xi32>
    %21 = arith.cmpi eq, %19, %20 : vector<16x16xi32>
    %22 = arith.extui %21 : vector<16x16xi1> to vector<16x16xi32>
    %23 = arith.sitofp %22 : vector<16x16xi32> to vector<16x16xf32>
    %24 = vector.broadcast %18 : vector<1x16xf32> to vector<16x16xf32>
    %25 = arith.divf %16, %24 : vector<16x16xf32>
    %26 = arith.addf %23, %25 : vector<16x16xf32>
    %cst_9 = arith.constant 5.000000e-01 : f32
    %27 = vector.broadcast %cst_9 : f32 to vector<16x16xf32>
    %28 = arith.mulf %27, %26 : vector<16x16xf32>
    %cst_10 = arith.constant dense<0.000000e+00> : vector<8xf32>
    %29 = vector.multi_reduction <add>, %1, %cst_10 [0] : vector<16x8xf32> to vector<8xf32>
    %30 = vector.shape_cast %29 : vector<8xf32> to vector<1x8xf32>
    %cst_11 = arith.constant 1.600000e+01 : f32
    %31 = vector.broadcast %cst_11 : f32 to vector<1x8xf32>
    %32 = arith.divf %30, %31 : vector<1x8xf32>
    %33 = vector.broadcast %32 : vector<1x8xf32> to vector<16x8xf32>
    %34 = arith.subf %1, %33 : vector<16x8xf32>
    %35 = arith.mulf %34, %34 : vector<16x8xf32>
    %36 = arith.mulf %35, %34 : vector<16x8xf32>
    %37 = arith.mulf %35, %35 : vector<16x8xf32>
    %cst_12 = arith.constant dense<0.000000e+00> : vector<8xf32>
    %38 = vector.multi_reduction <add>, %35, %cst_12 [0] : vector<16x8xf32> to vector<8xf32>
    %39 = vector.shape_cast %38 : vector<8xf32> to vector<1x8xf32>
    %cst_13 = arith.constant 1.600000e+01 : f32
    %40 = vector.broadcast %cst_13 : f32 to vector<1x8xf32>
    %41 = arith.divf %39, %40 : vector<1x8xf32>
    %cst_14 = arith.constant dense<0.000000e+00> : vector<8xf32>
    %42 = vector.multi_reduction <add>, %36, %cst_14 [0] : vector<16x8xf32> to vector<8xf32>
    %43 = vector.shape_cast %42 : vector<8xf32> to vector<1x8xf32>
    %cst_15 = arith.constant 1.600000e+01 : f32
    %44 = vector.broadcast %cst_15 : f32 to vector<1x8xf32>
    %45 = arith.divf %43, %44 : vector<1x8xf32>
    %cst_16 = arith.constant dense<0.000000e+00> : vector<8xf32>
    %46 = vector.multi_reduction <add>, %37, %cst_16 [0] : vector<16x8xf32> to vector<8xf32>
    %47 = vector.shape_cast %46 : vector<8xf32> to vector<1x8xf32>
    %cst_17 = arith.constant 1.600000e+01 : f32
    %48 = vector.broadcast %cst_17 : f32 to vector<1x8xf32>
    %49 = arith.divf %47, %48 : vector<1x8xf32>
    %50 = math.sqrt %41 : vector<1x8xf32>
    %51 = arith.mulf %41, %50 : vector<1x8xf32>
    %52 = arith.divf %45, %51 : vector<1x8xf32>
    %cst_18 = arith.constant 2.400000e+02 : f32
    %53 = math.sqrt %cst_18 : f32
    %54 = vector.broadcast %53 : f32 to vector<1x8xf32>
    %55 = arith.mulf %52, %54 : vector<1x8xf32>
    %cst_19 = arith.constant 1.400000e+01 : f32
    %56 = vector.broadcast %cst_19 : f32 to vector<1x8xf32>
    %57 = arith.divf %55, %56 : vector<1x8xf32>
    %58 = arith.mulf %41, %41 : vector<1x8xf32>
    %59 = arith.divf %49, %58 : vector<1x8xf32>
    %cst_20 = arith.constant 3.000000e+00 : f32
    %60 = vector.broadcast %cst_20 : f32 to vector<1x8xf32>
    %61 = arith.subf %59, %60 : vector<1x8xf32>
    %cst_21 = arith.constant 1.700000e+01 : f32
    %62 = vector.broadcast %cst_21 : f32 to vector<1x8xf32>
    %63 = arith.mulf %62, %61 : vector<1x8xf32>
    %cst_22 = arith.constant 6.000000e+00 : f32
    %64 = vector.broadcast %cst_22 : f32 to vector<1x8xf32>
    %65 = arith.addf %63, %64 : vector<1x8xf32>
    %cst_23 = arith.constant 1.500000e+01 : f32
    %66 = vector.broadcast %cst_23 : f32 to vector<1x8xf32>
    %67 = arith.mulf %65, %66 : vector<1x8xf32>
    %cst_24 = arith.constant 1.820000e+02 : f32
    %68 = vector.broadcast %cst_24 : f32 to vector<1x8xf32>
    %69 = arith.divf %67, %68 : vector<1x8xf32>
    %cst_25 = arith.constant dense<0.000000e+00> : vector<16x16xf32>
    %70 = tpu.matmul %28, %28, %cst_25 {dimension_numbers = #tpu.dot_dimension_numbers<[1], [0], [0], [1], [0, 0, 1, 1], [], []>} : vector<16x16xf32>, vector<16x16xf32>, vector<16x16xf32> -> vector<16x16xf32>
    %71 = arith.subf %28, %70 : vector<16x16xf32>
    %cst_26 = arith.constant dense<0.000000e+00> : vector<16x8xf32>
    %72 = tpu.matmul %71, %1, %cst_26 {dimension_numbers = #tpu.dot_dimension_numbers<[1], [0], [0], [1], [0, 0, 1, 1], [], []>} : vector<16x16xf32>, vector<16x8xf32>, vector<16x8xf32> -> vector<16x8xf32>
    %73 = math.absf %72 : vector<16x8xf32>
    %cst_27 = arith.constant dense<0.000000e+00> : vector<8xf32>
    %74 = vector.multi_reduction <add>, %73, %cst_27 [0] : vector<16x8xf32> to vector<8xf32>
    %75 = vector.shape_cast %74 : vector<8xf32> to vector<1x8xf32>
    %cst_28 = arith.constant 1.600000e+01 : f32
    %76 = vector.broadcast %cst_28 : f32 to vector<1x8xf32>
    %77 = arith.divf %75, %76 : vector<1x8xf32>
    %78 = vector.broadcast %77 : vector<1x8xf32> to vector<16x8xf32>
    %79 = arith.subf %73, %78 : vector<16x8xf32>
    %80 = arith.mulf %79, %79 : vector<16x8xf32>
    %81 = arith.mulf %80, %79 : vector<16x8xf32>
    %82 = arith.mulf %80, %80 : vector<16x8xf32>
    %cst_29 = arith.constant dense<0.000000e+00> : vector<8xf32>
    %83 = vector.multi_reduction <add>, %80, %cst_29 [0] : vector<16x8xf32> to vector<8xf32>
    %84 = vector.shape_cast %83 : vector<8xf32> to vector<1x8xf32>
    %cst_30 = arith.constant 1.600000e+01 : f32
    %85 = vector.broadcast %cst_30 : f32 to vector<1x8xf32>
    %86 = arith.divf %84, %85 : vector<1x8xf32>
    %cst_31 = arith.constant dense<0.000000e+00> : vector<8xf32>
    %87 = vector.multi_reduction <add>, %81, %cst_31 [0] : vector<16x8xf32> to vector<8xf32>
    %88 = vector.shape_cast %87 : vector<8xf32> to vector<1x8xf32>
    %cst_32 = arith.constant 1.600000e+01 : f32
    %89 = vector.broadcast %cst_32 : f32 to vector<1x8xf32>
    %90 = arith.divf %88, %89 : vector<1x8xf32>
    %cst_33 = arith.constant dense<0.000000e+00> : vector<8xf32>
    %91 = vector.multi_reduction <add>, %82, %cst_33 [0] : vector<16x8xf32> to vector<8xf32>
    %92 = vector.shape_cast %91 : vector<8xf32> to vector<1x8xf32>
    %cst_34 = arith.constant 1.600000e+01 : f32
    %93 = vector.broadcast %cst_34 : f32 to vector<1x8xf32>
    %94 = arith.divf %92, %93 : vector<1x8xf32>
    %95 = math.sqrt %86 : vector<1x8xf32>
    %96 = arith.mulf %86, %95 : vector<1x8xf32>
    %97 = arith.divf %90, %96 : vector<1x8xf32>
    %cst_35 = arith.constant 2.400000e+02 : f32
    %98 = math.sqrt %cst_35 : f32
    %99 = vector.broadcast %98 : f32 to vector<1x8xf32>
    %100 = arith.mulf %97, %99 : vector<1x8xf32>
    %cst_36 = arith.constant 1.400000e+01 : f32
    %101 = vector.broadcast %cst_36 : f32 to vector<1x8xf32>
    %102 = arith.divf %100, %101 : vector<1x8xf32>
    %103 = arith.mulf %86, %86 : vector<1x8xf32>
    %104 = arith.divf %94, %103 : vector<1x8xf32>
    %cst_37 = arith.constant 3.000000e+00 : f32
    %105 = vector.broadcast %cst_37 : f32 to vector<1x8xf32>
    %106 = arith.subf %104, %105 : vector<1x8xf32>
    %cst_38 = arith.constant 1.700000e+01 : f32
    %107 = vector.broadcast %cst_38 : f32 to vector<1x8xf32>
    %108 = arith.mulf %107, %106 : vector<1x8xf32>
    %cst_39 = arith.constant 6.000000e+00 : f32
    %109 = vector.broadcast %cst_39 : f32 to vector<1x8xf32>
    %110 = arith.addf %108, %109 : vector<1x8xf32>
    %cst_40 = arith.constant 1.500000e+01 : f32
    %111 = vector.broadcast %cst_40 : f32 to vector<1x8xf32>
    %112 = arith.mulf %110, %111 : vector<1x8xf32>
    %cst_41 = arith.constant 1.820000e+02 : f32
    %113 = vector.broadcast %cst_41 : f32 to vector<1x8xf32>
    %114 = arith.divf %112, %113 : vector<1x8xf32>
    %115 = tpu.concatenate %1, %73 in 1 : vector<16x8xf32>, vector<16x8xf32> -> vector<16x16xf32>
    %cst_42 = arith.constant dense<0.000000e+00> : vector<16x16xf32>
    %116 = tpu.matmul %70, %70, %cst_42 {dimension_numbers = #tpu.dot_dimension_numbers<[1], [0], [0], [1], [0, 0, 1, 1], [], []>} : vector<16x16xf32>, vector<16x16xf32>, vector<16x16xf32> -> vector<16x16xf32>
    %117 = arith.subf %70, %116 : vector<16x16xf32>
    %cst_43 = arith.constant dense<0.000000e+00> : vector<16x16xf32>
    %118 = tpu.matmul %117, %115, %cst_43 {dimension_numbers = #tpu.dot_dimension_numbers<[1], [0], [0], [1], [0, 0, 1, 1], [], []>} : vector<16x16xf32>, vector<16x16xf32>, vector<16x16xf32> -> vector<16x16xf32>
    %119 = math.absf %118 : vector<16x16xf32>
    %120 = vector.extract_strided_slice %119 {offsets = [0, 0], sizes = [16, 8], strides = [1, 1]} : vector<16x16xf32> to vector<16x8xf32>
    %cst_44 = arith.constant dense<0.000000e+00> : vector<8xf32>
    %121 = vector.multi_reduction <add>, %120, %cst_44 [0] : vector<16x8xf32> to vector<8xf32>
    %122 = vector.shape_cast %121 : vector<8xf32> to vector<1x8xf32>
    %cst_45 = arith.constant 1.600000e+01 : f32
    %123 = vector.broadcast %cst_45 : f32 to vector<1x8xf32>
    %124 = arith.divf %122, %123 : vector<1x8xf32>
    %125 = vector.broadcast %124 : vector<1x8xf32> to vector<16x8xf32>
    %126 = arith.subf %120, %125 : vector<16x8xf32>
    %127 = arith.mulf %126, %126 : vector<16x8xf32>
    %128 = arith.mulf %127, %126 : vector<16x8xf32>
    %129 = arith.mulf %127, %127 : vector<16x8xf32>
    %cst_46 = arith.constant dense<0.000000e+00> : vector<8xf32>
    %130 = vector.multi_reduction <add>, %127, %cst_46 [0] : vector<16x8xf32> to vector<8xf32>
    %131 = vector.shape_cast %130 : vector<8xf32> to vector<1x8xf32>
    %cst_47 = arith.constant 1.600000e+01 : f32
    %132 = vector.broadcast %cst_47 : f32 to vector<1x8xf32>
    %133 = arith.divf %131, %132 : vector<1x8xf32>
    %cst_48 = arith.constant dense<0.000000e+00> : vector<8xf32>
    %134 = vector.multi_reduction <add>, %128, %cst_48 [0] : vector<16x8xf32> to vector<8xf32>
    %135 = vector.shape_cast %134 : vector<8xf32> to vector<1x8xf32>
    %cst_49 = arith.constant 1.600000e+01 : f32
    %136 = vector.broadcast %cst_49 : f32 to vector<1x8xf32>
    %137 = arith.divf %135, %136 : vector<1x8xf32>
    %cst_50 = arith.constant dense<0.000000e+00> : vector<8xf32>
    %138 = vector.multi_reduction <add>, %129, %cst_50 [0] : vector<16x8xf32> to vector<8xf32>
    %139 = vector.shape_cast %138 : vector<8xf32> to vector<1x8xf32>
    %cst_51 = arith.constant 1.600000e+01 : f32
    %140 = vector.broadcast %cst_51 : f32 to vector<1x8xf32>
    %141 = arith.divf %139, %140 : vector<1x8xf32>
    %142 = math.sqrt %133 : vector<1x8xf32>
    %143 = arith.mulf %133, %142 : vector<1x8xf32>
    %144 = arith.divf %137, %143 : vector<1x8xf32>
    %cst_52 = arith.constant 2.400000e+02 : f32
    %145 = math.sqrt %cst_52 : f32
    %146 = vector.broadcast %145 : f32 to vector<1x8xf32>
    %147 = arith.mulf %144, %146 : vector<1x8xf32>
    %cst_53 = arith.constant 1.400000e+01 : f32
    %148 = vector.broadcast %cst_53 : f32 to vector<1x8xf32>
    %149 = arith.divf %147, %148 : vector<1x8xf32>
    %150 = arith.mulf %133, %133 : vector<1x8xf32>
    %151 = arith.divf %141, %150 : vector<1x8xf32>
    %cst_54 = arith.constant 3.000000e+00 : f32
    %152 = vector.broadcast %cst_54 : f32 to vector<1x8xf32>
    %153 = arith.subf %151, %152 : vector<1x8xf32>
    %cst_55 = arith.constant 1.700000e+01 : f32
    %154 = vector.broadcast %cst_55 : f32 to vector<1x8xf32>
    %155 = arith.mulf %154, %153 : vector<1x8xf32>
    %cst_56 = arith.constant 6.000000e+00 : f32
    %156 = vector.broadcast %cst_56 : f32 to vector<1x8xf32>
    %157 = arith.addf %155, %156 : vector<1x8xf32>
    %cst_57 = arith.constant 1.500000e+01 : f32
    %158 = vector.broadcast %cst_57 : f32 to vector<1x8xf32>
    %159 = arith.mulf %157, %158 : vector<1x8xf32>
    %cst_58 = arith.constant 1.820000e+02 : f32
    %160 = vector.broadcast %cst_58 : f32 to vector<1x8xf32>
    %161 = arith.divf %159, %160 : vector<1x8xf32>
    %162 = vector.extract_strided_slice %119 {offsets = [0, 8], sizes = [16, 8], strides = [1, 1]} : vector<16x16xf32> to vector<16x8xf32>
    %cst_59 = arith.constant dense<0.000000e+00> : vector<8xf32>
    %163 = vector.multi_reduction <add>, %162, %cst_59 [0] : vector<16x8xf32> to vector<8xf32>
    %164 = vector.shape_cast %163 : vector<8xf32> to vector<1x8xf32>
    %cst_60 = arith.constant 1.600000e+01 : f32
    %165 = vector.broadcast %cst_60 : f32 to vector<1x8xf32>
    %166 = arith.divf %164, %165 : vector<1x8xf32>
    %167 = vector.broadcast %166 : vector<1x8xf32> to vector<16x8xf32>
    %168 = arith.subf %162, %167 : vector<16x8xf32>
    %169 = arith.mulf %168, %168 : vector<16x8xf32>
    %170 = arith.mulf %169, %168 : vector<16x8xf32>
    %171 = arith.mulf %169, %169 : vector<16x8xf32>
    %cst_61 = arith.constant dense<0.000000e+00> : vector<8xf32>
    %172 = vector.multi_reduction <add>, %169, %cst_61 [0] : vector<16x8xf32> to vector<8xf32>
    %173 = vector.shape_cast %172 : vector<8xf32> to vector<1x8xf32>
    %cst_62 = arith.constant 1.600000e+01 : f32
    %174 = vector.broadcast %cst_62 : f32 to vector<1x8xf32>
    %175 = arith.divf %173, %174 : vector<1x8xf32>
    %cst_63 = arith.constant dense<0.000000e+00> : vector<8xf32>
    %176 = vector.multi_reduction <add>, %170, %cst_63 [0] : vector<16x8xf32> to vector<8xf32>
    %177 = vector.shape_cast %176 : vector<8xf32> to vector<1x8xf32>
    %cst_64 = arith.constant 1.600000e+01 : f32
    %178 = vector.broadcast %cst_64 : f32 to vector<1x8xf32>
    %179 = arith.divf %177, %178 : vector<1x8xf32>
    %cst_65 = arith.constant dense<0.000000e+00> : vector<8xf32>
    %180 = vector.multi_reduction <add>, %171, %cst_65 [0] : vector<16x8xf32> to vector<8xf32>
    %181 = vector.shape_cast %180 : vector<8xf32> to vector<1x8xf32>
    %cst_66 = arith.constant 1.600000e+01 : f32
    %182 = vector.broadcast %cst_66 : f32 to vector<1x8xf32>
    %183 = arith.divf %181, %182 : vector<1x8xf32>
    %184 = math.sqrt %175 : vector<1x8xf32>
    %185 = arith.mulf %175, %184 : vector<1x8xf32>
    %186 = arith.divf %179, %185 : vector<1x8xf32>
    %cst_67 = arith.constant 2.400000e+02 : f32
    %187 = math.sqrt %cst_67 : f32
    %188 = vector.broadcast %187 : f32 to vector<1x8xf32>
    %189 = arith.mulf %186, %188 : vector<1x8xf32>
    %cst_68 = arith.constant 1.400000e+01 : f32
    %190 = vector.broadcast %cst_68 : f32 to vector<1x8xf32>
    %191 = arith.divf %189, %190 : vector<1x8xf32>
    %192 = arith.mulf %175, %175 : vector<1x8xf32>
    %193 = arith.divf %183, %192 : vector<1x8xf32>
    %cst_69 = arith.constant 3.000000e+00 : f32
    %194 = vector.broadcast %cst_69 : f32 to vector<1x8xf32>
    %195 = arith.subf %193, %194 : vector<1x8xf32>
    %cst_70 = arith.constant 1.700000e+01 : f32
    %196 = vector.broadcast %cst_70 : f32 to vector<1x8xf32>
    %197 = arith.mulf %196, %195 : vector<1x8xf32>
    %cst_71 = arith.constant 6.000000e+00 : f32
    %198 = vector.broadcast %cst_71 : f32 to vector<1x8xf32>
    %199 = arith.addf %197, %198 : vector<1x8xf32>
    %cst_72 = arith.constant 1.500000e+01 : f32
    %200 = vector.broadcast %cst_72 : f32 to vector<1x8xf32>
    %201 = arith.mulf %199, %200 : vector<1x8xf32>
    %cst_73 = arith.constant 1.820000e+02 : f32
    %202 = vector.broadcast %cst_73 : f32 to vector<1x8xf32>
    %203 = arith.divf %201, %202 : vector<1x8xf32>
    %204 = tpu.concatenate %115, %120 in 1 : vector<16x16xf32>, vector<16x8xf32> -> vector<16x24xf32>
    %cst_74 = arith.constant dense<0.000000e+00> : vector<16x16xf32>
    %205 = tpu.matmul %116, %116, %cst_74 {dimension_numbers = #tpu.dot_dimension_numbers<[1], [0], [0], [1], [0, 0, 1, 1], [], []>} : vector<16x16xf32>, vector<16x16xf32>, vector<16x16xf32> -> vector<16x16xf32>
    %206 = arith.subf %116, %205 : vector<16x16xf32>
    %cst_75 = arith.constant dense<0.000000e+00> : vector<16x24xf32>
    %207 = tpu.matmul %206, %204, %cst_75 {dimension_numbers = #tpu.dot_dimension_numbers<[1], [0], [0], [1], [0, 0, 1, 1], [], []>} : vector<16x16xf32>, vector<16x24xf32>, vector<16x24xf32> -> vector<16x24xf32>
    %208 = math.absf %207 : vector<16x24xf32>
    %209 = vector.extract_strided_slice %208 {offsets = [0, 0], sizes = [16, 8], strides = [1, 1]} : vector<16x24xf32> to vector<16x8xf32>
    %cst_76 = arith.constant dense<0.000000e+00> : vector<8xf32>
    %210 = vector.multi_reduction <add>, %209, %cst_76 [0] : vector<16x8xf32> to vector<8xf32>
    %211 = vector.shape_cast %210 : vector<8xf32> to vector<1x8xf32>
    %cst_77 = arith.constant 1.600000e+01 : f32
    %212 = vector.broadcast %cst_77 : f32 to vector<1x8xf32>
    %213 = arith.divf %211, %212 : vector<1x8xf32>
    %214 = vector.broadcast %213 : vector<1x8xf32> to vector<16x8xf32>
    %215 = arith.subf %209, %214 : vector<16x8xf32>
    %216 = arith.mulf %215, %215 : vector<16x8xf32>
    %217 = arith.mulf %216, %215 : vector<16x8xf32>
    %218 = arith.mulf %216, %216 : vector<16x8xf32>
    %cst_78 = arith.constant dense<0.000000e+00> : vector<8xf32>
    %219 = vector.multi_reduction <add>, %216, %cst_78 [0] : vector<16x8xf32> to vector<8xf32>
    %220 = vector.shape_cast %219 : vector<8xf32> to vector<1x8xf32>
    %cst_79 = arith.constant 1.600000e+01 : f32
    %221 = vector.broadcast %cst_79 : f32 to vector<1x8xf32>
    %222 = arith.divf %220, %221 : vector<1x8xf32>
    %cst_80 = arith.constant dense<0.000000e+00> : vector<8xf32>
    %223 = vector.multi_reduction <add>, %217, %cst_80 [0] : vector<16x8xf32> to vector<8xf32>
    %224 = vector.shape_cast %223 : vector<8xf32> to vector<1x8xf32>
    %cst_81 = arith.constant 1.600000e+01 : f32
    %225 = vector.broadcast %cst_81 : f32 to vector<1x8xf32>
    %226 = arith.divf %224, %225 : vector<1x8xf32>
    %cst_82 = arith.constant dense<0.000000e+00> : vector<8xf32>
    %227 = vector.multi_reduction <add>, %218, %cst_82 [0] : vector<16x8xf32> to vector<8xf32>
    %228 = vector.shape_cast %227 : vector<8xf32> to vector<1x8xf32>
    %cst_83 = arith.constant 1.600000e+01 : f32
    %229 = vector.broadcast %cst_83 : f32 to vector<1x8xf32>
    %230 = arith.divf %228, %229 : vector<1x8xf32>
    %231 = math.sqrt %222 : vector<1x8xf32>
    %232 = arith.mulf %222, %231 : vector<1x8xf32>
    %233 = arith.divf %226, %232 : vector<1x8xf32>
    %cst_84 = arith.constant 2.400000e+02 : f32
    %234 = math.sqrt %cst_84 : f32
    %235 = vector.broadcast %234 : f32 to vector<1x8xf32>
    %236 = arith.mulf %233, %235 : vector<1x8xf32>
    %cst_85 = arith.constant 1.400000e+01 : f32
    %237 = vector.broadcast %cst_85 : f32 to vector<1x8xf32>
    %238 = arith.divf %236, %237 : vector<1x8xf32>
    %239 = arith.mulf %222, %222 : vector<1x8xf32>
    %240 = arith.divf %230, %239 : vector<1x8xf32>
    %cst_86 = arith.constant 3.000000e+00 : f32
    %241 = vector.broadcast %cst_86 : f32 to vector<1x8xf32>
    %242 = arith.subf %240, %241 : vector<1x8xf32>
    %cst_87 = arith.constant 1.700000e+01 : f32
    %243 = vector.broadcast %cst_87 : f32 to vector<1x8xf32>
    %244 = arith.mulf %243, %242 : vector<1x8xf32>
    %cst_88 = arith.constant 6.000000e+00 : f32
    %245 = vector.broadcast %cst_88 : f32 to vector<1x8xf32>
    %246 = arith.addf %244, %245 : vector<1x8xf32>
    %cst_89 = arith.constant 1.500000e+01 : f32
    %247 = vector.broadcast %cst_89 : f32 to vector<1x8xf32>
    %248 = arith.mulf %246, %247 : vector<1x8xf32>
    %cst_90 = arith.constant 1.820000e+02 : f32
    %249 = vector.broadcast %cst_90 : f32 to vector<1x8xf32>
    %250 = arith.divf %248, %249 : vector<1x8xf32>
    %251 = vector.extract_strided_slice %208 {offsets = [0, 8], sizes = [16, 8], strides = [1, 1]} : vector<16x24xf32> to vector<16x8xf32>
    %cst_91 = arith.constant dense<0.000000e+00> : vector<8xf32>
    %252 = vector.multi_reduction <add>, %251, %cst_91 [0] : vector<16x8xf32> to vector<8xf32>
    %253 = vector.shape_cast %252 : vector<8xf32> to vector<1x8xf32>
    %cst_92 = arith.constant 1.600000e+01 : f32
    %254 = vector.broadcast %cst_92 : f32 to vector<1x8xf32>
    %255 = arith.divf %253, %254 : vector<1x8xf32>
    %256 = vector.broadcast %255 : vector<1x8xf32> to vector<16x8xf32>
    %257 = arith.subf %251, %256 : vector<16x8xf32>
    %258 = arith.mulf %257, %257 : vector<16x8xf32>
    %259 = arith.mulf %258, %257 : vector<16x8xf32>
    %260 = arith.mulf %258, %258 : vector<16x8xf32>
    %cst_93 = arith.constant dense<0.000000e+00> : vector<8xf32>
    %261 = vector.multi_reduction <add>, %258, %cst_93 [0] : vector<16x8xf32> to vector<8xf32>
    %262 = vector.shape_cast %261 : vector<8xf32> to vector<1x8xf32>
    %cst_94 = arith.constant 1.600000e+01 : f32
    %263 = vector.broadcast %cst_94 : f32 to vector<1x8xf32>
    %264 = arith.divf %262, %263 : vector<1x8xf32>
    %cst_95 = arith.constant dense<0.000000e+00> : vector<8xf32>
    %265 = vector.multi_reduction <add>, %259, %cst_95 [0] : vector<16x8xf32> to vector<8xf32>
    %266 = vector.shape_cast %265 : vector<8xf32> to vector<1x8xf32>
    %cst_96 = arith.constant 1.600000e+01 : f32
    %267 = vector.broadcast %cst_96 : f32 to vector<1x8xf32>
    %268 = arith.divf %266, %267 : vector<1x8xf32>
    %cst_97 = arith.constant dense<0.000000e+00> : vector<8xf32>
    %269 = vector.multi_reduction <add>, %260, %cst_97 [0] : vector<16x8xf32> to vector<8xf32>
    %270 = vector.shape_cast %269 : vector<8xf32> to vector<1x8xf32>
    %cst_98 = arith.constant 1.600000e+01 : f32
    %271 = vector.broadcast %cst_98 : f32 to vector<1x8xf32>
    %272 = arith.divf %270, %271 : vector<1x8xf32>
    %273 = math.sqrt %264 : vector<1x8xf32>
    %274 = arith.mulf %264, %273 : vector<1x8xf32>
    %275 = arith.divf %268, %274 : vector<1x8xf32>
    %cst_99 = arith.constant 2.400000e+02 : f32
    %276 = math.sqrt %cst_99 : f32
    %277 = vector.broadcast %276 : f32 to vector<1x8xf32>
    %278 = arith.mulf %275, %277 : vector<1x8xf32>
    %cst_100 = arith.constant 1.400000e+01 : f32
    %279 = vector.broadcast %cst_100 : f32 to vector<1x8xf32>
    %280 = arith.divf %278, %279 : vector<1x8xf32>
    %281 = arith.mulf %264, %264 : vector<1x8xf32>
    %282 = arith.divf %272, %281 : vector<1x8xf32>
    %cst_101 = arith.constant 3.000000e+00 : f32
    %283 = vector.broadcast %cst_101 : f32 to vector<1x8xf32>
    %284 = arith.subf %282, %283 : vector<1x8xf32>
    %cst_102 = arith.constant 1.700000e+01 : f32
    %285 = vector.broadcast %cst_102 : f32 to vector<1x8xf32>
    %286 = arith.mulf %285, %284 : vector<1x8xf32>
    %cst_103 = arith.constant 6.000000e+00 : f32
    %287 = vector.broadcast %cst_103 : f32 to vector<1x8xf32>
    %288 = arith.addf %286, %287 : vector<1x8xf32>
    %cst_104 = arith.constant 1.500000e+01 : f32
    %289 = vector.broadcast %cst_104 : f32 to vector<1x8xf32>
    %290 = arith.mulf %288, %289 : vector<1x8xf32>
    %cst_105 = arith.constant 1.820000e+02 : f32
    %291 = vector.broadcast %cst_105 : f32 to vector<1x8xf32>
    %292 = arith.divf %290, %291 : vector<1x8xf32>
    %293 = vector.extract_strided_slice %208 {offsets = [0, 16], sizes = [16, 8], strides = [1, 1]} : vector<16x24xf32> to vector<16x8xf32>
    %cst_106 = arith.constant dense<0.000000e+00> : vector<8xf32>
    %294 = vector.multi_reduction <add>, %293, %cst_106 [0] : vector<16x8xf32> to vector<8xf32>
    %295 = vector.shape_cast %294 : vector<8xf32> to vector<1x8xf32>
    %cst_107 = arith.constant 1.600000e+01 : f32
    %296 = vector.broadcast %cst_107 : f32 to vector<1x8xf32>
    %297 = arith.divf %295, %296 : vector<1x8xf32>
    %298 = vector.broadcast %297 : vector<1x8xf32> to vector<16x8xf32>
    %299 = arith.subf %293, %298 : vector<16x8xf32>
    %300 = arith.mulf %299, %299 : vector<16x8xf32>
    %301 = arith.mulf %300, %299 : vector<16x8xf32>
    %302 = arith.mulf %300, %300 : vector<16x8xf32>
    %cst_108 = arith.constant dense<0.000000e+00> : vector<8xf32>
    %303 = vector.multi_reduction <add>, %300, %cst_108 [0] : vector<16x8xf32> to vector<8xf32>
    %304 = vector.shape_cast %303 : vector<8xf32> to vector<1x8xf32>
    %cst_109 = arith.constant 1.600000e+01 : f32
    %305 = vector.broadcast %cst_109 : f32 to vector<1x8xf32>
    %306 = arith.divf %304, %305 : vector<1x8xf32>
    %cst_110 = arith.constant dense<0.000000e+00> : vector<8xf32>
    %307 = vector.multi_reduction <add>, %301, %cst_110 [0] : vector<16x8xf32> to vector<8xf32>
    %308 = vector.shape_cast %307 : vector<8xf32> to vector<1x8xf32>
    %cst_111 = arith.constant 1.600000e+01 : f32
    %309 = vector.broadcast %cst_111 : f32 to vector<1x8xf32>
    %310 = arith.divf %308, %309 : vector<1x8xf32>
    %cst_112 = arith.constant dense<0.000000e+00> : vector<8xf32>
    %311 = vector.multi_reduction <add>, %302, %cst_112 [0] : vector<16x8xf32> to vector<8xf32>
    %312 = vector.shape_cast %311 : vector<8xf32> to vector<1x8xf32>
    %cst_113 = arith.constant 1.600000e+01 : f32
    %313 = vector.broadcast %cst_113 : f32 to vector<1x8xf32>
    %314 = arith.divf %312, %313 : vector<1x8xf32>
    %315 = math.sqrt %306 : vector<1x8xf32>
    %316 = arith.mulf %306, %315 : vector<1x8xf32>
    %317 = arith.divf %310, %316 : vector<1x8xf32>
    %cst_114 = arith.constant 2.400000e+02 : f32
    %318 = math.sqrt %cst_114 : f32
    %319 = vector.broadcast %318 : f32 to vector<1x8xf32>
    %320 = arith.mulf %317, %319 : vector<1x8xf32>
    %cst_115 = arith.constant 1.400000e+01 : f32
    %321 = vector.broadcast %cst_115 : f32 to vector<1x8xf32>
    %322 = arith.divf %320, %321 : vector<1x8xf32>
    %323 = arith.mulf %306, %306 : vector<1x8xf32>
    %324 = arith.divf %314, %323 : vector<1x8xf32>
    %cst_116 = arith.constant 3.000000e+00 : f32
    %325 = vector.broadcast %cst_116 : f32 to vector<1x8xf32>
    %326 = arith.subf %324, %325 : vector<1x8xf32>
    %cst_117 = arith.constant 1.700000e+01 : f32
    %327 = vector.broadcast %cst_117 : f32 to vector<1x8xf32>
    %328 = arith.mulf %327, %326 : vector<1x8xf32>
    %cst_118 = arith.constant 6.000000e+00 : f32
    %329 = vector.broadcast %cst_118 : f32 to vector<1x8xf32>
    %330 = arith.addf %328, %329 : vector<1x8xf32>
    %cst_119 = arith.constant 1.500000e+01 : f32
    %331 = vector.broadcast %cst_119 : f32 to vector<1x8xf32>
    %332 = arith.mulf %330, %331 : vector<1x8xf32>
    %cst_120 = arith.constant 1.820000e+02 : f32
    %333 = vector.broadcast %cst_120 : f32 to vector<1x8xf32>
    %334 = arith.divf %332, %333 : vector<1x8xf32>
    %335 = tpu.concatenate %204, %209 in 1 : vector<16x24xf32>, vector<16x8xf32> -> vector<16x32xf32>
    %cst_121 = arith.constant dense<0.000000e+00> : vector<16x16xf32>
    %336 = tpu.matmul %205, %205, %cst_121 {dimension_numbers = #tpu.dot_dimension_numbers<[1], [0], [0], [1], [0, 0, 1, 1], [], []>} : vector<16x16xf32>, vector<16x16xf32>, vector<16x16xf32> -> vector<16x16xf32>
    %337 = arith.subf %205, %336 : vector<16x16xf32>
    %cst_122 = arith.constant dense<0.000000e+00> : vector<16x32xf32>
    %338 = tpu.matmul %337, %335, %cst_122 {dimension_numbers = #tpu.dot_dimension_numbers<[1], [0], [0], [1], [0, 0, 1, 1], [], []>} : vector<16x16xf32>, vector<16x32xf32>, vector<16x32xf32> -> vector<16x32xf32>
    %339 = math.absf %338 : vector<16x32xf32>
    %340 = vector.extract_strided_slice %339 {offsets = [0, 0], sizes = [16, 8], strides = [1, 1]} : vector<16x32xf32> to vector<16x8xf32>
    %cst_123 = arith.constant dense<0.000000e+00> : vector<8xf32>
    %341 = vector.multi_reduction <add>, %340, %cst_123 [0] : vector<16x8xf32> to vector<8xf32>
    %342 = vector.shape_cast %341 : vector<8xf32> to vector<1x8xf32>
    %cst_124 = arith.constant 1.600000e+01 : f32
    %343 = vector.broadcast %cst_124 : f32 to vector<1x8xf32>
    %344 = arith.divf %342, %343 : vector<1x8xf32>
    %345 = vector.broadcast %344 : vector<1x8xf32> to vector<16x8xf32>
    %346 = arith.subf %340, %345 : vector<16x8xf32>
    %347 = arith.mulf %346, %346 : vector<16x8xf32>
    %348 = arith.mulf %347, %346 : vector<16x8xf32>
    %349 = arith.mulf %347, %347 : vector<16x8xf32>
    %cst_125 = arith.constant dense<0.000000e+00> : vector<8xf32>
    %350 = vector.multi_reduction <add>, %347, %cst_125 [0] : vector<16x8xf32> to vector<8xf32>
    %351 = vector.shape_cast %350 : vector<8xf32> to vector<1x8xf32>
    %cst_126 = arith.constant 1.600000e+01 : f32
    %352 = vector.broadcast %cst_126 : f32 to vector<1x8xf32>
    %353 = arith.divf %351, %352 : vector<1x8xf32>
    %cst_127 = arith.constant dense<0.000000e+00> : vector<8xf32>
    %354 = vector.multi_reduction <add>, %348, %cst_127 [0] : vector<16x8xf32> to vector<8xf32>
    %355 = vector.shape_cast %354 : vector<8xf32> to vector<1x8xf32>
    %cst_128 = arith.constant 1.600000e+01 : f32
    %356 = vector.broadcast %cst_128 : f32 to vector<1x8xf32>
    %357 = arith.divf %355, %356 : vector<1x8xf32>
    %cst_129 = arith.constant dense<0.000000e+00> : vector<8xf32>
    %358 = vector.multi_reduction <add>, %349, %cst_129 [0] : vector<16x8xf32> to vector<8xf32>
    %359 = vector.shape_cast %358 : vector<8xf32> to vector<1x8xf32>
    %cst_130 = arith.constant 1.600000e+01 : f32
    %360 = vector.broadcast %cst_130 : f32 to vector<1x8xf32>
    %361 = arith.divf %359, %360 : vector<1x8xf32>
    %362 = math.sqrt %353 : vector<1x8xf32>
    %363 = arith.mulf %353, %362 : vector<1x8xf32>
    %364 = arith.divf %357, %363 : vector<1x8xf32>
    %cst_131 = arith.constant 2.400000e+02 : f32
    %365 = math.sqrt %cst_131 : f32
    %366 = vector.broadcast %365 : f32 to vector<1x8xf32>
    %367 = arith.mulf %364, %366 : vector<1x8xf32>
    %cst_132 = arith.constant 1.400000e+01 : f32
    %368 = vector.broadcast %cst_132 : f32 to vector<1x8xf32>
    %369 = arith.divf %367, %368 : vector<1x8xf32>
    %370 = arith.mulf %353, %353 : vector<1x8xf32>
    %371 = arith.divf %361, %370 : vector<1x8xf32>
    %cst_133 = arith.constant 3.000000e+00 : f32
    %372 = vector.broadcast %cst_133 : f32 to vector<1x8xf32>
    %373 = arith.subf %371, %372 : vector<1x8xf32>
    %cst_134 = arith.constant 1.700000e+01 : f32
    %374 = vector.broadcast %cst_134 : f32 to vector<1x8xf32>
    %375 = arith.mulf %374, %373 : vector<1x8xf32>
    %cst_135 = arith.constant 6.000000e+00 : f32
    %376 = vector.broadcast %cst_135 : f32 to vector<1x8xf32>
    %377 = arith.addf %375, %376 : vector<1x8xf32>
    %cst_136 = arith.constant 1.500000e+01 : f32
    %378 = vector.broadcast %cst_136 : f32 to vector<1x8xf32>
    %379 = arith.mulf %377, %378 : vector<1x8xf32>
    %cst_137 = arith.constant 1.820000e+02 : f32
    %380 = vector.broadcast %cst_137 : f32 to vector<1x8xf32>
    %381 = arith.divf %379, %380 : vector<1x8xf32>
    %382 = vector.extract_strided_slice %339 {offsets = [0, 8], sizes = [16, 8], strides = [1, 1]} : vector<16x32xf32> to vector<16x8xf32>
    %cst_138 = arith.constant dense<0.000000e+00> : vector<8xf32>
    %383 = vector.multi_reduction <add>, %382, %cst_138 [0] : vector<16x8xf32> to vector<8xf32>
    %384 = vector.shape_cast %383 : vector<8xf32> to vector<1x8xf32>
    %cst_139 = arith.constant 1.600000e+01 : f32
    %385 = vector.broadcast %cst_139 : f32 to vector<1x8xf32>
    %386 = arith.divf %384, %385 : vector<1x8xf32>
    %387 = vector.broadcast %386 : vector<1x8xf32> to vector<16x8xf32>
    %388 = arith.subf %382, %387 : vector<16x8xf32>
    %389 = arith.mulf %388, %388 : vector<16x8xf32>
    %390 = arith.mulf %389, %388 : vector<16x8xf32>
    %391 = arith.mulf %389, %389 : vector<16x8xf32>
    %cst_140 = arith.constant dense<0.000000e+00> : vector<8xf32>
    %392 = vector.multi_reduction <add>, %389, %cst_140 [0] : vector<16x8xf32> to vector<8xf32>
    %393 = vector.shape_cast %392 : vector<8xf32> to vector<1x8xf32>
    %cst_141 = arith.constant 1.600000e+01 : f32
    %394 = vector.broadcast %cst_141 : f32 to vector<1x8xf32>
    %395 = arith.divf %393, %394 : vector<1x8xf32>
    %cst_142 = arith.constant dense<0.000000e+00> : vector<8xf32>
    %396 = vector.multi_reduction <add>, %390, %cst_142 [0] : vector<16x8xf32> to vector<8xf32>
    %397 = vector.shape_cast %396 : vector<8xf32> to vector<1x8xf32>
    %cst_143 = arith.constant 1.600000e+01 : f32
    %398 = vector.broadcast %cst_143 : f32 to vector<1x8xf32>
    %399 = arith.divf %397, %398 : vector<1x8xf32>
    %cst_144 = arith.constant dense<0.000000e+00> : vector<8xf32>
    %400 = vector.multi_reduction <add>, %391, %cst_144 [0] : vector<16x8xf32> to vector<8xf32>
    %401 = vector.shape_cast %400 : vector<8xf32> to vector<1x8xf32>
    %cst_145 = arith.constant 1.600000e+01 : f32
    %402 = vector.broadcast %cst_145 : f32 to vector<1x8xf32>
    %403 = arith.divf %401, %402 : vector<1x8xf32>
    %404 = math.sqrt %395 : vector<1x8xf32>
    %405 = arith.mulf %395, %404 : vector<1x8xf32>
    %406 = arith.divf %399, %405 : vector<1x8xf32>
    %cst_146 = arith.constant 2.400000e+02 : f32
    %407 = math.sqrt %cst_146 : f32
    %408 = vector.broadcast %407 : f32 to vector<1x8xf32>
    %409 = arith.mulf %406, %408 : vector<1x8xf32>
    %cst_147 = arith.constant 1.400000e+01 : f32
    %410 = vector.broadcast %cst_147 : f32 to vector<1x8xf32>
    %411 = arith.divf %409, %410 : vector<1x8xf32>
    %412 = arith.mulf %395, %395 : vector<1x8xf32>
    %413 = arith.divf %403, %412 : vector<1x8xf32>
    %cst_148 = arith.constant 3.000000e+00 : f32
    %414 = vector.broadcast %cst_148 : f32 to vector<1x8xf32>
    %415 = arith.subf %413, %414 : vector<1x8xf32>
    %cst_149 = arith.constant 1.700000e+01 : f32
    %416 = vector.broadcast %cst_149 : f32 to vector<1x8xf32>
    %417 = arith.mulf %416, %415 : vector<1x8xf32>
    %cst_150 = arith.constant 6.000000e+00 : f32
    %418 = vector.broadcast %cst_150 : f32 to vector<1x8xf32>
    %419 = arith.addf %417, %418 : vector<1x8xf32>
    %cst_151 = arith.constant 1.500000e+01 : f32
    %420 = vector.broadcast %cst_151 : f32 to vector<1x8xf32>
    %421 = arith.mulf %419, %420 : vector<1x8xf32>
    %cst_152 = arith.constant 1.820000e+02 : f32
    %422 = vector.broadcast %cst_152 : f32 to vector<1x8xf32>
    %423 = arith.divf %421, %422 : vector<1x8xf32>
    %424 = vector.extract_strided_slice %339 {offsets = [0, 16], sizes = [16, 8], strides = [1, 1]} : vector<16x32xf32> to vector<16x8xf32>
    %cst_153 = arith.constant dense<0.000000e+00> : vector<8xf32>
    %425 = vector.multi_reduction <add>, %424, %cst_153 [0] : vector<16x8xf32> to vector<8xf32>
    %426 = vector.shape_cast %425 : vector<8xf32> to vector<1x8xf32>
    %cst_154 = arith.constant 1.600000e+01 : f32
    %427 = vector.broadcast %cst_154 : f32 to vector<1x8xf32>
    %428 = arith.divf %426, %427 : vector<1x8xf32>
    %429 = vector.broadcast %428 : vector<1x8xf32> to vector<16x8xf32>
    %430 = arith.subf %424, %429 : vector<16x8xf32>
    %431 = arith.mulf %430, %430 : vector<16x8xf32>
    %432 = arith.mulf %431, %430 : vector<16x8xf32>
    %433 = arith.mulf %431, %431 : vector<16x8xf32>
    %cst_155 = arith.constant dense<0.000000e+00> : vector<8xf32>
    %434 = vector.multi_reduction <add>, %431, %cst_155 [0] : vector<16x8xf32> to vector<8xf32>
    %435 = vector.shape_cast %434 : vector<8xf32> to vector<1x8xf32>
    %cst_156 = arith.constant 1.600000e+01 : f32
    %436 = vector.broadcast %cst_156 : f32 to vector<1x8xf32>
    %437 = arith.divf %435, %436 : vector<1x8xf32>
    %cst_157 = arith.constant dense<0.000000e+00> : vector<8xf32>
    %438 = vector.multi_reduction <add>, %432, %cst_157 [0] : vector<16x8xf32> to vector<8xf32>
    %439 = vector.shape_cast %438 : vector<8xf32> to vector<1x8xf32>
    %cst_158 = arith.constant 1.600000e+01 : f32
    %440 = vector.broadcast %cst_158 : f32 to vector<1x8xf32>
    %441 = arith.divf %439, %440 : vector<1x8xf32>
    %cst_159 = arith.constant dense<0.000000e+00> : vector<8xf32>
    %442 = vector.multi_reduction <add>, %433, %cst_159 [0] : vector<16x8xf32> to vector<8xf32>
    %443 = vector.shape_cast %442 : vector<8xf32> to vector<1x8xf32>
    %cst_160 = arith.constant 1.600000e+01 : f32
    %444 = vector.broadcast %cst_160 : f32 to vector<1x8xf32>
    %445 = arith.divf %443, %444 : vector<1x8xf32>
    %446 = math.sqrt %437 : vector<1x8xf32>
    %447 = arith.mulf %437, %446 : vector<1x8xf32>
    %448 = arith.divf %441, %447 : vector<1x8xf32>
    %cst_161 = arith.constant 2.400000e+02 : f32
    %449 = math.sqrt %cst_161 : f32
    %450 = vector.broadcast %449 : f32 to vector<1x8xf32>
    %451 = arith.mulf %448, %450 : vector<1x8xf32>
    %cst_162 = arith.constant 1.400000e+01 : f32
    %452 = vector.broadcast %cst_162 : f32 to vector<1x8xf32>
    %453 = arith.divf %451, %452 : vector<1x8xf32>
    %454 = arith.mulf %437, %437 : vector<1x8xf32>
    %455 = arith.divf %445, %454 : vector<1x8xf32>
    %cst_163 = arith.constant 3.000000e+00 : f32
    %456 = vector.broadcast %cst_163 : f32 to vector<1x8xf32>
    %457 = arith.subf %455, %456 : vector<1x8xf32>
    %cst_164 = arith.constant 1.700000e+01 : f32
    %458 = vector.broadcast %cst_164 : f32 to vector<1x8xf32>
    %459 = arith.mulf %458, %457 : vector<1x8xf32>
    %cst_165 = arith.constant 6.000000e+00 : f32
    %460 = vector.broadcast %cst_165 : f32 to vector<1x8xf32>
    %461 = arith.addf %459, %460 : vector<1x8xf32>
    %cst_166 = arith.constant 1.500000e+01 : f32
    %462 = vector.broadcast %cst_166 : f32 to vector<1x8xf32>
    %463 = arith.mulf %461, %462 : vector<1x8xf32>
    %cst_167 = arith.constant 1.820000e+02 : f32
    %464 = vector.broadcast %cst_167 : f32 to vector<1x8xf32>
    %465 = arith.divf %463, %464 : vector<1x8xf32>
    %466 = vector.extract_strided_slice %339 {offsets = [0, 24], sizes = [16, 8], strides = [1, 1]} : vector<16x32xf32> to vector<16x8xf32>
    %cst_168 = arith.constant dense<0.000000e+00> : vector<8xf32>
    %467 = vector.multi_reduction <add>, %466, %cst_168 [0] : vector<16x8xf32> to vector<8xf32>
    %468 = vector.shape_cast %467 : vector<8xf32> to vector<1x8xf32>
    %cst_169 = arith.constant 1.600000e+01 : f32
    %469 = vector.broadcast %cst_169 : f32 to vector<1x8xf32>
    %470 = arith.divf %468, %469 : vector<1x8xf32>
    %471 = vector.broadcast %470 : vector<1x8xf32> to vector<16x8xf32>
    %472 = arith.subf %466, %471 : vector<16x8xf32>
    %473 = arith.mulf %472, %472 : vector<16x8xf32>
    %474 = arith.mulf %473, %472 : vector<16x8xf32>
    %475 = arith.mulf %473, %473 : vector<16x8xf32>
    %cst_170 = arith.constant dense<0.000000e+00> : vector<8xf32>
    %476 = vector.multi_reduction <add>, %473, %cst_170 [0] : vector<16x8xf32> to vector<8xf32>
    %477 = vector.shape_cast %476 : vector<8xf32> to vector<1x8xf32>
    %cst_171 = arith.constant 1.600000e+01 : f32
    %478 = vector.broadcast %cst_171 : f32 to vector<1x8xf32>
    %479 = arith.divf %477, %478 : vector<1x8xf32>
    %cst_172 = arith.constant dense<0.000000e+00> : vector<8xf32>
    %480 = vector.multi_reduction <add>, %474, %cst_172 [0] : vector<16x8xf32> to vector<8xf32>
    %481 = vector.shape_cast %480 : vector<8xf32> to vector<1x8xf32>
    %cst_173 = arith.constant 1.600000e+01 : f32
    %482 = vector.broadcast %cst_173 : f32 to vector<1x8xf32>
    %483 = arith.divf %481, %482 : vector<1x8xf32>
    %cst_174 = arith.constant dense<0.000000e+00> : vector<8xf32>
    %484 = vector.multi_reduction <add>, %475, %cst_174 [0] : vector<16x8xf32> to vector<8xf32>
    %485 = vector.shape_cast %484 : vector<8xf32> to vector<1x8xf32>
    %cst_175 = arith.constant 1.600000e+01 : f32
    %486 = vector.broadcast %cst_175 : f32 to vector<1x8xf32>
    %487 = arith.divf %485, %486 : vector<1x8xf32>
    %488 = math.sqrt %479 : vector<1x8xf32>
    %489 = arith.mulf %479, %488 : vector<1x8xf32>
    %490 = arith.divf %483, %489 : vector<1x8xf32>
    %cst_176 = arith.constant 2.400000e+02 : f32
    %491 = math.sqrt %cst_176 : f32
    %492 = vector.broadcast %491 : f32 to vector<1x8xf32>
    %493 = arith.mulf %490, %492 : vector<1x8xf32>
    %cst_177 = arith.constant 1.400000e+01 : f32
    %494 = vector.broadcast %cst_177 : f32 to vector<1x8xf32>
    %495 = arith.divf %493, %494 : vector<1x8xf32>
    %496 = arith.mulf %479, %479 : vector<1x8xf32>
    %497 = arith.divf %487, %496 : vector<1x8xf32>
    %cst_178 = arith.constant 3.000000e+00 : f32
    %498 = vector.broadcast %cst_178 : f32 to vector<1x8xf32>
    %499 = arith.subf %497, %498 : vector<1x8xf32>
    %cst_179 = arith.constant 1.700000e+01 : f32
    %500 = vector.broadcast %cst_179 : f32 to vector<1x8xf32>
    %501 = arith.mulf %500, %499 : vector<1x8xf32>
    %cst_180 = arith.constant 6.000000e+00 : f32
    %502 = vector.broadcast %cst_180 : f32 to vector<1x8xf32>
    %503 = arith.addf %501, %502 : vector<1x8xf32>
    %cst_181 = arith.constant 1.500000e+01 : f32
    %504 = vector.broadcast %cst_181 : f32 to vector<1x8xf32>
    %505 = arith.mulf %503, %504 : vector<1x8xf32>
    %cst_182 = arith.constant 1.820000e+02 : f32
    %506 = vector.broadcast %cst_182 : f32 to vector<1x8xf32>
    %507 = arith.divf %505, %506 : vector<1x8xf32>
    %508 = tpu.concatenate %32, %41, %57, %69, %77, %124, %213, %344, %86, %133, %222, %353, %102, %149, %238, %369 in 0 : vector<1x8xf32>, vector<1x8xf32>, vector<1x8xf32>, vector<1x8xf32>, vector<1x8xf32>, vector<1x8xf32>, vector<1x8xf32>, vector<1x8xf32>, vector<1x8xf32>, vector<1x8xf32>, vector<1x8xf32>, vector<1x8xf32>, vector<1x8xf32>, vector<1x8xf32>, vector<1x8xf32>, vector<1x8xf32> -> vector<16x8xf32>
    %509 = tpu.concatenate %114, %161, %250, %381, %166, %255, %297, %386, %428, %470, %175, %264, %306, %395, %437, %479 in 0 : vector<1x8xf32>, vector<1x8xf32>, vector<1x8xf32>, vector<1x8xf32>, vector<1x8xf32>, vector<1x8xf32>, vector<1x8xf32>, vector<1x8xf32>, vector<1x8xf32>, vector<1x8xf32>, vector<1x8xf32>, vector<1x8xf32>, vector<1x8xf32>, vector<1x8xf32>, vector<1x8xf32>, vector<1x8xf32> -> vector<16x8xf32>
    %510 = tpu.concatenate %191, %280, %322, %411, %453, %495, %203, %292, %334, %423, %465, %507 in 0 : vector<1x8xf32>, vector<1x8xf32>, vector<1x8xf32>, vector<1x8xf32>, vector<1x8xf32>, vector<1x8xf32>, vector<1x8xf32>, vector<1x8xf32>, vector<1x8xf32>, vector<1x8xf32>, vector<1x8xf32>, vector<1x8xf32> -> vector<12x8xf32>
    %511 = tpu.concatenate %508, %509, %510 in 0 : vector<16x8xf32>, vector<16x8xf32>, vector<12x8xf32> -> vector<44x8xf32>
    %c0_183 = arith.constant 0 : index
    %c0_184 = arith.constant 0 : index
    %512 = vector.load %arg3[%c0_183, %c0_184] : memref<44x8xf32, #tpu.memory_space<vmem>>, vector<44x8xf32>
    tpu.vector_store %arg3[%c0_183, %c0_184], %511 {strides = array<i32>} : memref<44x8xf32, #tpu.memory_space<vmem>>, vector<44x8xf32>,
    return
  }
  func.func @transform_0(%arg0: i32) -> (i32, i32) {
    %c0_i32 = arith.constant 0 : i32
    %c0_i32_0 = arith.constant 0 : i32
    %c0_i32_1 = arith.constant 0 : i32
    return %c0_i32, %c0_i32_0 : i32, i32
  }
  func.func @transform_1(%arg0: i32) -> (i32, i32) {
    %c0_i32 = arith.constant 0 : i32
    %c0_i32_0 = arith.constant 0 : i32
    %c0_i32_1 = arith.constant 0 : i32
    return %c0_i32, %c0_i32_0 : i32, i32
  }
  func.func @transform_2(%arg0: i32) -> (i32, i32) {
    %c0_i32 = arith.constant 0 : i32
    %c0_i32_0 = arith.constant 0 : i32
    %c0_i32_1 = arith.constant 0 : i32
    return %c0_i32, %c0_i32_0 : i32, i32
  }
}

</mosaic_0001>

<llo_original>
// kernel: tpu_custom_call.1
$region0: #{tpu_custom_call.1}
  #allocation0 [shape = 'u32[]', space=smem, size = 0x4, offset = 0x4, fixed_abs, tag = 'smem constant byte address 0x4 - core index']
  #allocation1 [shape = 'u32[144,128]{1,0:T(1,128)}', space=vmem, size = 0x12000, scoped, tag = 'internal scratch']
  %s0 = inlined_call_operand.vmem [shape: f32[16,3], index: 0, kind: input, shape index: {}]
  %s1 = inlined_call_operand.vmem [shape: f32[16,8], index: 1, kind: input, shape index: {}]
  %s2 = inlined_call_operand.vmem [shape: f32[44,8], index: 2, kind: output, shape index: {}]
  %s3 = sld [smem:[#allocation0]]
  $region18: #{tpu_custom_call.1} parent=0
    _
  %s5 = ssub.s32 1, %s3
  %s6 = scalar_select 0, %s5, %s3
  // Predicated region
  $region2: #{tpu_custom_call.1} parent=0 // pred_check
    _
  $region3: #{tpu_custom_call.1} parent=0 // pred_check_branch
    %8 = sbr.rel (0) target = $region5
  $region4: #{tpu_custom_call.1} parent=0 // pred_region
    _
  $region5: #{tpu_custom_call.1} parent=0 // pred_fallthru
    _
  // Predicated region
  $region6: #{tpu_custom_call.1} parent=0 // pred_check
    _
  $region7: #{tpu_custom_call.1} parent=0 // pred_check_branch
    %10 = sbr.rel (0) target = $region9
  $region8: #{tpu_custom_call.1} parent=0 // pred_region
    _
  $region9: #{tpu_custom_call.1} parent=0 // pred_fallthru
    _
  %v11 = vld [vmem:[%s0] sm:$0xff]
  %v12 = vld [vmem:[%s0 + $0x8] sm:$0xff]
  %v13 = vld [vmem:[%s1] sm:$0xff]
  %v14 = vld [vmem:[%s1 + $0x8] sm:$0xff]
  %vm15 = vcmask 23552
  %v17 = vsel %vm15, %v11, 0
  %v20 = vsel %vm15, %v12, 0
  %22 = vmatprep.subr.mxu0 0.0
  %23 = vmatpush1.xpose.msra.mxu0 0.0
  %24 = vmatprep.subr.mxu0 0.0
  %25 = vmatpush1.xpose.msra.mxu0 0.0
  %26 = vmatprep.subr.mxu0 0.0
  %27 = vmatpush1.xpose.msra.mxu0 0.0
  %28 = vmatprep.subr.mxu0 0.0
  %29 = vmatpush1.xpose.msra.mxu0 0.0
  %30 = vmatprep.subr.mxu0 0.0
  %31 = vmatpush1.xpose.msra.mxu0 0.0
  %32 = vmatprep.subr.mxu0 0.0
  %33 = vmatpush1.xpose.msra.mxu0 0.0
  %34 = vmatprep.subr.mxu0 0.0
  %35 = vmatpush1.xpose.msra.mxu0 0.0
  %36 = vmatprep.subr.mxu0 0.0
  %37 = vmatpush1.xpose.msra.mxu0 0.0
  %38 = vmatprep.subr.mxu0 0.0
  %39 = vmatpush1.xpose.msra.mxu0 0.0
  %40 = vmatprep.subr.mxu0 0.0
  %41 = vmatpush1.xpose.msra.mxu0 0.0
  %42 = vmatprep.subr.mxu0 0.0
  %43 = vmatpush1.xpose.msra.mxu0 0.0
  %44 = vmatprep.subr.mxu0 0.0
  %45 = vmatpush1.xpose.msra.mxu0 0.0
  %46 = vmatprep.subr.mxu0 0.0
  %47 = vmatpush1.xpose.msra.mxu0 0.0
  %48 = vmatprep.subr.mxu0 0.0
  %49 = vmatpush1.xpose.msra.mxu0 0.0
  %50 = vmatprep.subr.mxu0 0.0
  %51 = vmatpush1.xpose.msra.mxu0 %v20
  %52 = vmatprep.subr.mxu0 0.0
  %53 = vmatpush1.xpose.msra.mxu0 %v17
  %54 = vmatprep.subr.mxu0 0.0
  %55 = vmatpush2.xpose.msra.mxu0 0.0
  %56 = vmatprep.subr.mxu0 0.0
  %57 = vmatpush2.xpose.msra.mxu0 0.0
  %58 = vmatprep.subr.mxu0 0.0
  %59 = vmatpush2.xpose.msra.mxu0 0.0
  %60 = vmatprep.subr.mxu0 0.0
  %61 = vmatpush2.xpose.msra.mxu0 0.0
  %62 = vmatprep.subr.mxu0 0.0
  %63 = vmatpush2.xpose.msra.mxu0 0.0
  %64 = vmatprep.subr.mxu0 0.0
  %65 = vmatpush2.xpose.msra.mxu0 0.0
  %66 = vmatprep.subr.mxu0 0.0
  %67 = vmatpush2.xpose.msra.mxu0 0.0
  %68 = vmatprep.subr.mxu0 0.0
  %69 = vmatpush2.xpose.msra.mxu0 0.0
  %70 = vmatprep.subr.mxu0 0.0
  %71 = vmatpush2.xpose.msra.mxu0 0.0
  %72 = vmatprep.subr.mxu0 0.0
  %73 = vmatpush2.xpose.msra.mxu0 0.0
  %74 = vmatprep.subr.mxu0 0.0
  %75 = vmatpush2.xpose.msra.mxu0 0.0
  %76 = vmatprep.subr.mxu0 0.0
  %77 = vmatpush2.xpose.msra.mxu0 0.0
  %78 = vmatprep.subr.mxu0 0.0
  %79 = vmatpush2.xpose.msra.mxu0 0.0
  %80 = vmatprep.subr.mxu0 0.0
  %81 = vmatpush2.xpose.msra.mxu0 0.0
  %82 = vmatprep.subr.mxu0 0.0
  %83 = vmatpush2.xpose.msra.mxu0 0.0
  %84 = vmatprep.subr.mxu0 0.0
  %85 = vmatpush2.xpose.msra.mxu0 0.0
  %86 = vmatprep.mubr.f32.mxu0 0.0
  %87 = vmatmul.mubr.f32.gmra.mxu0 %v17
  %v88 = vpop.f32.mrf.mxu0
  %v89 = vadd.f32 0.0, %v88
  %v90 = vpop.f32.mrf.mxu0
  %91 = vmatprep.mubr.f32.mxu0 0.0
  %92 = vmatmul.mubr.f32.gmra.mxu0 %v20
  %v93 = vpop.f32.mrf.mxu0
  %v94 = vadd.f32 0.0, %v93
  %v95 = vpop.f32.mrf.mxu0
  %96 = vdwg.mxu0
  %v97 = vmul.f32 %v11, %v11
  %v98 = vmul.f32 %v12, %v12
  %v99 = vsel %vm15, %v97, 0.0
  %100 = vadd.xlane.f32.xlu0 %v99
  %v101 = vpop.xlane.xlu0 %100
  %v102 = vsel %vm15, %v98, 0.0
  %103 = vadd.xlane.f32.xlu0 %v102
  %v104 = vpop.xlane.xlu0 %103
  %vm105 = vcmask 7168
  %v107 = vsel %vm105, 1.0, 0
  %v110 = vsel %vm105, %v101, 0
  %v113 = vsel %vm105, %v104, 0
  %115 = vmatprep.subr.mxu0 0.0
  %116 = vmatpush1.xpose.msra.mxu0 0.0
  %117 = vmatprep.subr.mxu0 0.0
  %118 = vmatpush1.xpose.msra.mxu0 0.0
  %119 = vmatprep.subr.mxu0 0.0
  %120 = vmatpush1.xpose.msra.mxu0 0.0
  %121 = vmatprep.subr.mxu0 0.0
  %122 = vmatpush1.xpose.msra.mxu0 0.0
  %123 = vmatprep.subr.mxu0 0.0
  %124 = vmatpush1.xpose.msra.mxu0 0.0
  %125 = vmatprep.subr.mxu0 0.0
  %126 = vmatpush1.xpose.msra.mxu0 0.0
  %127 = vmatprep.subr.mxu0 0.0
  %128 = vmatpush1.xpose.msra.mxu0 0.0
  %129 = vmatprep.subr.mxu0 0.0
  %130 = vmatpush1.xpose.msra.mxu0 0.0
  %131 = vmatprep.subr.mxu0 0.0
  %132 = vmatpush1.xpose.msra.mxu0 0.0
  %133 = vmatprep.subr.mxu0 0.0
  %134 = vmatpush1.xpose.msra.mxu0 0.0
  %135 = vmatprep.subr.mxu0 0.0
  %136 = vmatpush1.xpose.msra.mxu0 0.0
  %137 = vmatprep.subr.mxu0 0.0
  %138 = vmatpush1.xpose.msra.mxu0 0.0
  %139 = vmatprep.subr.mxu0 0.0
  %140 = vmatpush1.xpose.msra.mxu0 0.0
  %141 = vmatprep.subr.mxu0 0.0
  %142 = vmatpush1.xpose.msra.mxu0 0.0
  %143 = vmatprep.subr.mxu0 0.0
  %144 = vmatpush1.xpose.msra.mxu0 %v113
  %145 = vmatprep.subr.mxu0 0.0
  %146 = vmatpush1.xpose.msra.mxu0 %v110
  %147 = vmatprep.subr.mxu0 0.0
  %148 = vmatpush2.xpose.msra.mxu0 0.0
  %149 = vmatprep.subr.mxu0 0.0
  %150 = vmatpush2.xpose.msra.mxu0 0.0
  %151 = vmatprep.subr.mxu0 0.0
  %152 = vmatpush2.xpose.msra.mxu0 0.0
  %153 = vmatprep.subr.mxu0 0.0
  %154 = vmatpush2.xpose.msra.mxu0 0.0
  %155 = vmatprep.subr.mxu0 0.0
  %156 = vmatpush2.xpose.msra.mxu0 0.0
  %157 = vmatprep.subr.mxu0 0.0
  %158 = vmatpush2.xpose.msra.mxu0 0.0
  %159 = vmatprep.subr.mxu0 0.0
  %160 = vmatpush2.xpose.msra.mxu0 0.0
  %161 = vmatprep.subr.mxu0 0.0
  %162 = vmatpush2.xpose.msra.mxu0 0.0
  %163 = vmatprep.subr.mxu0 0.0
  %164 = vmatpush2.xpose.msra.mxu0 0.0
  %165 = vmatprep.subr.mxu0 0.0
  %166 = vmatpush2.xpose.msra.mxu0 0.0
  %167 = vmatprep.subr.mxu0 0.0
  %168 = vmatpush2.xpose.msra.mxu0 0.0
  %169 = vmatprep.subr.mxu0 0.0
  %170 = vmatpush2.xpose.msra.mxu0 0.0
  %171 = vmatprep.subr.mxu0 0.0
  %172 = vmatpush2.xpose.msra.mxu0 0.0
  %173 = vmatprep.subr.mxu0 0.0
  %174 = vmatpush2.xpose.msra.mxu0 0.0
  %175 = vmatprep.subr.mxu0 0.0
  %176 = vmatpush2.xpose.msra.mxu0 0.0
  %177 = vmatprep.subr.mxu0 0.0
  %178 = vmatpush2.xpose.msra.mxu0 0.0
  %179 = vmatprep.mubr.f32.mxu0 0.0
  %180 = vmatmul.mubr.f32.gmra.mxu0 %v107
  %v181 = vpop.f32.mrf.mxu0
  %v182 = vadd.f32 0.0, %v181
  %v183 = vpop.f32.mrf.mxu0
  %184 = vmatprep.mubr.f32.mxu0 0.0
  %185 = vmatmul.mubr.f32.gmra.mxu0 %v107
  %v186 = vpop.f32.mrf.mxu0
  %v187 = vadd.f32 0.0, %v186
  %v188 = vpop.f32.mrf.mxu0
  %189 = vdwg.mxu0
  %v190 = vadd.f32 %v101, %v182
  %v191 = vadd.f32 %v104, %v187
  %v192 = vmul.f32 %v89, 2.0
  %v193 = vmul.f32 %v94, 2.0
  %v194 = vsub.f32 %v190, %v192
  %v195 = vsub.f32 %v191, %v193
  %vm196 = vcmp.lt.f32.partialorder %v194, 0.2704
  %vm197 = vcmp.lt.f32.partialorder %v195, 0.2704
  %v198 = vsel %vm196, 1, 0
  %v199 = vsel %vm197, 1, 0
  %v200 = vcvt.s32.f32 %v198
  %v201 = vcvt.s32.f32 %v199
  %vm202 = vcmask 130048
  %v203 = vsel %vm202, %v200, 0.0
  %v204 = vsel %vm202, %v201, 0.0
  %v205 = vadd.f32 %v203, %v204
  %v206 = vrot.slane %v205, 4
  %v207 = vadd.f32 %v205, %v206
  %v208 = vrot.slane %v207, 2
  %v209 = vadd.f32 %v207, %v208
  %v210 = vrot.slane %v209, 1
  %v211 = vadd.f32 %v209, %v210
  %v212 = vlaneseq
  %v213 = vshrl.u32 %v212, 7
  %v214 = vadd.s32 %v213, 8
  %v215 = vlaneseq
  %v216 = vand.u32 %v215, 127
  %vm217 = vcmp.eq.s32.totalorder %v213, %v216
  %vm218 = vcmp.eq.s32.totalorder %v214, %v216
  %v219 = vsel %vm217, 1, 0
  %v220 = vsel %vm218, 1, 0
  %v221 = vcvt.s32.f32 %v219
  %v222 = vcvt.s32.f32 %v220
  %v223 = vrcp.pop %v211
  %v224 = vmul.f32 %v200, %v223
  %v225 = vmul.f32 %v201, %v223
  %v226 = vadd.f32 %v221, %v224
  %v227 = vadd.f32 %v222, %v225
  %v228 = vmul.f32 %v226, 0.5
  %v229 = vmul.f32 %v227, 0.5
  %vm230 = vcmask 64512
  %v231 = vsel %vm230, %v13, 0.0
  %v232 = vsel %vm230, %v14, 0.0
  %v233 = vadd.f32 %v231, %v232
  %v234 = vrot.slane %v233, 4
  %v235 = vadd.f32 %v233, %v234
  %v236 = vrot.slane %v235, 2
  %v237 = vadd.f32 %v235, %v236
  %v238 = vrot.slane %v237, 1
  %v239 = vadd.f32 %v237, %v238
  %v240 = vrcp.pop 16.0
  %v241 = vmul.f32 %v239, %v240
  %v242 = vsub.f32 %v13, %v241
  %v243 = vsub.f32 %v14, %v241
  %v244 = vmul.f32 %v242, %v242
  %v245 = vmul.f32 %v243, %v243
  %v246 = vmul.f32 %v244, %v242
  %v247 = vmul.f32 %v245, %v243
  %v248 = vmul.f32 %v244, %v244
  %v249 = vmul.f32 %v245, %v245
  %v250 = vsel %vm230, %v244, 0.0
  %v251 = vsel %vm230, %v245, 0.0
  %v252 = vadd.f32 %v250, %v251
  %v253 = vrot.slane %v252, 4
  %v254 = vadd.f32 %v252, %v253
  %v255 = vrot.slane %v254, 2
  %v256 = vadd.f32 %v254, %v255
  %v257 = vrot.slane %v256, 1
  %v258 = vadd.f32 %v256, %v257
  %v259 = vmul.f32 %v258, %v240
  %v260 = vsel %vm230, %v246, 0.0
  %v261 = vsel %vm230, %v247, 0.0
  %v262 = vadd.f32 %v260, %v261
  %v263 = vrot.slane %v262, 4
  %v264 = vadd.f32 %v262, %v263
  %v265 = vrot.slane %v264, 2
  %v266 = vadd.f32 %v264, %v265
  %v267 = vrot.slane %v266, 1
  %v268 = vadd.f32 %v266, %v267
  %v269 = vmul.f32 %v268, %v240
  %v270 = vsel %vm230, %v248, 0.0
  %v271 = vsel %vm230, %v249, 0.0
  %v272 = vadd.f32 %v270, %v271
  %v273 = vrot.slane %v272, 4
  %v274 = vadd.f32 %v272, %v273
  %v275 = vrot.slane %v274, 2
  %v276 = vadd.f32 %v274, %v275
  %v277 = vrot.slane %v276, 1
  %v278 = vadd.f32 %v276, %v277
  %v279 = vmul.f32 %v278, %v240
  %v280 = vrsqrt.pop %v259
  %v281 = vmul.f32 %v259, %v280
  %vm282 = vcmp.eq.f32.partialorder %v259, inf
  %v283 = vsel %vm282, %v259, %v281
  %vm284 = vcmp.eq.f32.partialorder %v259, 0.0
  %v285 = vand.u32 %v259, 2147483648
  %v286 = vsel %vm284, %v285, %v283
  %v287 = vmul.f32 %v259, %v286
  %v288 = vrcp.pop %v287
  %v289 = vmul.f32 %v269, %v288
  %v290 = vmul.f32 %v289, 15.491934
  %v291 = vrcp.pop 14.0
  %v292 = vmul.f32 %v290, %v291
  %v293 = vmul.f32 %v259, %v259
  %v294 = vrcp.pop %v293
  %v295 = vmul.f32 %v279, %v294
  %v296 = vsub.f32 %v295, 3.0
  %v297 = vmul.f32 %v296, 17.0
  %v298 = vadd.f32 %v297, 6.0
  %v299 = vmul.f32 %v298, 15.0
  %v300 = vrcp.pop 182.0
  %v301 = vmul.f32 %v299, %v300
  %v303 = vsel %vm202, %v228, 0
  %v306 = vsel %vm202, %v229, 0
  %308 = vmatprep.subr.mxu0 0.0
  %309 = vmatpush1.msra.mxu0 0.0
  %310 = vmatprep.subr.mxu0 0.0
  %311 = vmatpush1.msra.mxu0 0.0
  %312 = vmatprep.subr.mxu0 0.0
  %313 = vmatpush1.msra.mxu0 0.0
  %314 = vmatprep.subr.mxu0 0.0
  %315 = vmatpush1.msra.mxu0 0.0
  %316 = vmatprep.subr.mxu0 0.0
  %317 = vmatpush1.msra.mxu0 0.0
  %318 = vmatprep.subr.mxu0 0.0
  %319 = vmatpush1.msra.mxu0 0.0
  %320 = vmatprep.subr.mxu0 0.0
  %321 = vmatpush1.msra.mxu0 0.0
  %322 = vmatprep.subr.mxu0 0.0
  %323 = vmatpush1.msra.mxu0 0.0
  %324 = vmatprep.subr.mxu0 0.0
  %325 = vmatpush1.msra.mxu0 0.0
  %326 = vmatprep.subr.mxu0 0.0
  %327 = vmatpush1.msra.mxu0 0.0
  %328 = vmatprep.subr.mxu0 0.0
  %329 = vmatpush1.msra.mxu0 0.0
  %330 = vmatprep.subr.mxu0 0.0
  %331 = vmatpush1.msra.mxu0 0.0
  %332 = vmatprep.subr.mxu0 0.0
  %333 = vmatpush1.msra.mxu0 0.0
  %334 = vmatprep.subr.mxu0 0.0
  %335 = vmatpush1.msra.mxu0 0.0
  %336 = vmatprep.subr.mxu0 0.0
  %337 = vmatpush1.msra.mxu0 %v229
  %338 = vmatprep.subr.mxu0 0.0
  %339 = vmatpush1.msra.mxu0 %v228
  %340 = vmatprep.subr.mxu0 0.0
  %341 = vmatpush2.msra.mxu0 0.0
  %342 = vmatprep.subr.mxu0 0.0
  %343 = vmatpush2.msra.mxu0 0.0
  %344 = vmatprep.subr.mxu0 0.0
  %345 = vmatpush2.msra.mxu0 0.0
  %346 = vmatprep.subr.mxu0 0.0
  %347 = vmatpush2.msra.mxu0 0.0
  %348 = vmatprep.subr.mxu0 0.0
  %349 = vmatpush2.msra.mxu0 0.0
  %350 = vmatprep.subr.mxu0 0.0
  %351 = vmatpush2.msra.mxu0 0.0
  %352 = vmatprep.subr.mxu0 0.0
  %353 = vmatpush2.msra.mxu0 0.0
  %354 = vmatprep.subr.mxu0 0.0
  %355 = vmatpush2.msra.mxu0 0.0
  %356 = vmatprep.subr.mxu0 0.0
  %357 = vmatpush2.msra.mxu0 0.0
  %358 = vmatprep.subr.mxu0 0.0
  %359 = vmatpush2.msra.mxu0 0.0
  %360 = vmatprep.subr.mxu0 0.0
  %361 = vmatpush2.msra.mxu0 0.0
  %362 = vmatprep.subr.mxu0 0.0
  %363 = vmatpush2.msra.mxu0 0.0
  %364 = vmatprep.subr.mxu0 0.0
  %365 = vmatpush2.msra.mxu0 0.0
  %366 = vmatprep.subr.mxu0 0.0
  %367 = vmatpush2.msra.mxu0 0.0
  %368 = vmatprep.subr.mxu0 0.0
  %369 = vmatpush2.msra.mxu0 0.0
  %370 = vmatprep.subr.mxu0 0.0
  %371 = vmatpush2.msra.mxu0 0.0
  %372 = vmatprep.mubr.f32.mxu0 0.0
  %373 = vmatmul.mubr.f32.gmra.mxu0 %v303
  %v374 = vpop.f32.mrf.mxu0
  %v375 = vadd.f32 0.0, %v374
  %v376 = vpop.f32.mrf.mxu0
  %377 = vmatprep.mubr.f32.mxu0 0.0
  %378 = vmatmul.mubr.f32.gmra.mxu0 %v306
  %v379 = vpop.f32.mrf.mxu0
  %v380 = vadd.f32 0.0, %v379
  %v381 = vpop.f32.mrf.mxu0
  %382 = vdwg.mxu0
  %v383 = vsub.f32 %v228, %v375
  %v384 = vsub.f32 %v229, %v380
  %v386 = vsel %vm202, %v383, 0
  %v389 = vsel %vm202, %v384, 0
  %391 = vmatprep.subr.mxu0 0.0
  %392 = vmatpush1.msra.mxu0 0.0
  %393 = vmatprep.subr.mxu0 0.0
  %394 = vmatpush1.msra.mxu0 0.0
  %395 = vmatprep.subr.mxu0 0.0
  %396 = vmatpush1.msra.mxu0 0.0
  %397 = vmatprep.subr.mxu0 0.0
  %398 = vmatpush1.msra.mxu0 0.0
  %399 = vmatprep.subr.mxu0 0.0
  %400 = vmatpush1.msra.mxu0 0.0
  %401 = vmatprep.subr.mxu0 0.0
  %402 = vmatpush1.msra.mxu0 0.0
  %403 = vmatprep.subr.mxu0 0.0
  %404 = vmatpush1.msra.mxu0 0.0
  %405 = vmatprep.subr.mxu0 0.0
  %406 = vmatpush1.msra.mxu0 0.0
  %407 = vmatprep.subr.mxu0 0.0
  %408 = vmatpush1.msra.mxu0 0.0
  %409 = vmatprep.subr.mxu0 0.0
  %410 = vmatpush1.msra.mxu0 0.0
  %411 = vmatprep.subr.mxu0 0.0
  %412 = vmatpush1.msra.mxu0 0.0
  %413 = vmatprep.subr.mxu0 0.0
  %414 = vmatpush1.msra.mxu0 0.0
  %415 = vmatprep.subr.mxu0 0.0
  %416 = vmatpush1.msra.mxu0 0.0
  %417 = vmatprep.subr.mxu0 0.0
  %418 = vmatpush1.msra.mxu0 0.0
  %419 = vmatprep.subr.mxu0 0.0
  %420 = vmatpush1.msra.mxu0 %v14
  %421 = vmatprep.subr.mxu0 0.0
  %422 = vmatpush1.msra.mxu0 %v13
  %423 = vmatprep.subr.mxu0 0.0
  %424 = vmatpush2.msra.mxu0 0.0
  %425 = vmatprep.subr.mxu0 0.0
  %426 = vmatpush2.msra.mxu0 0.0
  %427 = vmatprep.subr.mxu0 0.0
  %428 = vmatpush2.msra.mxu0 0.0
  %429 = vmatprep.subr.mxu0 0.0
  %430 = vmatpush2.msra.mxu0 0.0
  %431 = vmatprep.subr.mxu0 0.0
  %432 = vmatpush2.msra.mxu0 0.0
  %433 = vmatprep.subr.mxu0 0.0
  %434 = vmatpush2.msra.mxu0 0.0
  %435 = vmatprep.subr.mxu0 0.0
  %436 = vmatpush2.msra.mxu0 0.0
  %437 = vmatprep.subr.mxu0 0.0
  %438 = vmatpush2.msra.mxu0 0.0
  %439 = vmatprep.subr.mxu0 0.0
  %440 = vmatpush2.msra.mxu0 0.0
  %441 = vmatprep.subr.mxu0 0.0
  %442 = vmatpush2.msra.mxu0 0.0
  %443 = vmatprep.subr.mxu0 0.0
  %444 = vmatpush2.msra.mxu0 0.0
  %445 = vmatprep.subr.mxu0 0.0
  %446 = vmatpush2.msra.mxu0 0.0
  %447 = vmatprep.subr.mxu0 0.0
  %448 = vmatpush2.msra.mxu0 0.0
  %449 = vmatprep.subr.mxu0 0.0
  %450 = vmatpush2.msra.mxu0 0.0
  %451 = vmatprep.subr.mxu0 0.0
  %452 = vmatpush2.msra.mxu0 0.0
  %453 = vmatprep.subr.mxu0 0.0
  %454 = vmatpush2.msra.mxu0 0.0
  %455 = vmatprep.mubr.f32.mxu0 0.0
  %456 = vmatmul.mubr.f32.gmra.mxu0 %v386
  %v457 = vpop.f32.mrf.mxu0
  %v458 = vadd.f32 0.0, %v457
  %v459 = vpop.f32.mrf.mxu0
  %460 = vmatprep.mubr.f32.mxu0 0.0
  %461 = vmatmul.mubr.f32.gmra.mxu0 %v389
  %v462 = vpop.f32.mrf.mxu0
  %v463 = vadd.f32 0.0, %v462
  %v464 = vpop.f32.mrf.mxu0
  %465 = vdwg.mxu0
  %v466 = vand.u32 2147483647, %v458
  %v467 = vand.u32 2147483647, %v463
  %v468 = vsel %vm230, %v466, 0.0
  %v469 = vsel %vm230, %v467, 0.0
  %v470 = vadd.f32 %v468, %v469
  %v471 = vrot.slane %v470, 4
  %v472 = vadd.f32 %v470, %v471
  %v473 = vrot.slane %v472, 2
  %v474 = vadd.f32 %v472, %v473
  %v475 = vrot.slane %v474, 1
  %v476 = vadd.f32 %v474, %v475
  %v477 = vmul.f32 %v476, %v240
  %v478 = vsub.f32 %v466, %v477
  %v479 = vsub.f32 %v467, %v477
  %v480 = vmul.f32 %v478, %v478
  %v481 = vmul.f32 %v479, %v479
  %v482 = vmul.f32 %v480, %v478
  %v483 = vmul.f32 %v481, %v479
  %v484 = vmul.f32 %v480, %v480
  %v485 = vmul.f32 %v481, %v481
  %v486 = vsel %vm230, %v480, 0.0
  %v487 = vsel %vm230, %v481, 0.0
  %v488 = vadd.f32 %v486, %v487
  %v489 = vrot.slane %v488, 4
  %v490 = vadd.f32 %v488, %v489
  %v491 = vrot.slane %v490, 2
  %v492 = vadd.f32 %v490, %v491
  %v493 = vrot.slane %v492, 1
  %v494 = vadd.f32 %v492, %v493
  %v495 = vmul.f32 %v494, %v240
  %v496 = vsel %vm230, %v482, 0.0
  %v497 = vsel %vm230, %v483, 0.0
  %v498 = vadd.f32 %v496, %v497
  %v499 = vrot.slane %v498, 4
  %v500 = vadd.f32 %v498, %v499
  %v501 = vrot.slane %v500, 2
  %v502 = vadd.f32 %v500, %v501
  %v503 = vrot.slane %v502, 1
  %v504 = vadd.f32 %v502, %v503
  %v505 = vmul.f32 %v504, %v240
  %v506 = vsel %vm230, %v484, 0.0
  %v507 = vsel %vm230, %v485, 0.0
  %v508 = vadd.f32 %v506, %v507
  %v509 = vrot.slane %v508, 4
  %v510 = vadd.f32 %v508, %v509
  %v511 = vrot.slane %v510, 2
  %v512 = vadd.f32 %v510, %v511
  %v513 = vrot.slane %v512, 1
  %v514 = vadd.f32 %v512, %v513
  %v515 = vmul.f32 %v514, %v240
  %v516 = vrsqrt.pop %v495
  %v517 = vmul.f32 %v495, %v516
  %vm518 = vcmp.eq.f32.partialorder %v495, inf
  %v519 = vsel %vm518, %v495, %v517
  %vm520 = vcmp.eq.f32.partialorder %v495, 0.0
  %v521 = vand.u32 %v495, 2147483648
  %v522 = vsel %vm520, %v521, %v519
  %v523 = vmul.f32 %v495, %v522
  %v524 = vrcp.pop %v523
  %v525 = vmul.f32 %v505, %v524
  %v526 = vmul.f32 %v525, 15.491934
  %v527 = vmul.f32 %v526, %v291
  %v528 = vmul.f32 %v495, %v495
  %v529 = vrcp.pop %v528
  %v530 = vmul.f32 %v515, %v529
  %v531 = vsub.f32 %v530, 3.0
  %v532 = vmul.f32 %v531, 17.0
  %v533 = vadd.f32 %v532, 6.0
  %v534 = vmul.f32 %v533, 15.0
  %v535 = vmul.f32 %v534, %v300
  %538 = vrot.lane.b32.xlu0 %v466, 8
  %v539 = vpop.permute.xlu0 %538
  %540 = vrot.lane.b32.xlu0 %v467, 8
  %v541 = vpop.permute.xlu0 %540
  %v544 = vsel %vm230, %v13, %v539
  %v545 = vsel %vm230, %v14, %v541
  %v547 = vsel %vm202, %v375, 0
  %v550 = vsel %vm202, %v380, 0
  %552 = vmatprep.subr.mxu0 0.0
  %553 = vmatpush1.msra.mxu0 0.0
  %554 = vmatprep.subr.mxu0 0.0
  %555 = vmatpush1.msra.mxu0 0.0
  %556 = vmatprep.subr.mxu0 0.0
  %557 = vmatpush1.msra.mxu0 0.0
  %558 = vmatprep.subr.mxu0 0.0
  %559 = vmatpush1.msra.mxu0 0.0
  %560 = vmatprep.subr.mxu0 0.0
  %561 = vmatpush1.msra.mxu0 0.0
  %562 = vmatprep.subr.mxu0 0.0
  %563 = vmatpush1.msra.mxu0 0.0
  %564 = vmatprep.subr.mxu0 0.0
  %565 = vmatpush1.msra.mxu0 0.0
  %566 = vmatprep.subr.mxu0 0.0
  %567 = vmatpush1.msra.mxu0 0.0
  %568 = vmatprep.subr.mxu0 0.0
  %569 = vmatpush1.msra.mxu0 0.0
  %570 = vmatprep.subr.mxu0 0.0
  %571 = vmatpush1.msra.mxu0 0.0
  %572 = vmatprep.subr.mxu0 0.0
  %573 = vmatpush1.msra.mxu0 0.0
  %574 = vmatprep.subr.mxu0 0.0
  %575 = vmatpush1.msra.mxu0 0.0
  %576 = vmatprep.subr.mxu0 0.0
  %577 = vmatpush1.msra.mxu0 0.0
  %578 = vmatprep.subr.mxu0 0.0
  %579 = vmatpush1.msra.mxu0 0.0
  %580 = vmatprep.subr.mxu0 0.0
  %581 = vmatpush1.msra.mxu0 %v380
  %582 = vmatprep.subr.mxu0 0.0
  %583 = vmatpush1.msra.mxu0 %v375
  %584 = vmatprep.subr.mxu0 0.0
  %585 = vmatpush2.msra.mxu0 0.0
  %586 = vmatprep.subr.mxu0 0.0
  %587 = vmatpush2.msra.mxu0 0.0
  %588 = vmatprep.subr.mxu0 0.0
  %589 = vmatpush2.msra.mxu0 0.0
  %590 = vmatprep.subr.mxu0 0.0
  %591 = vmatpush2.msra.mxu0 0.0
  %592 = vmatprep.subr.mxu0 0.0
  %593 = vmatpush2.msra.mxu0 0.0
  %594 = vmatprep.subr.mxu0 0.0
  %595 = vmatpush2.msra.mxu0 0.0
  %596 = vmatprep.subr.mxu0 0.0
  %597 = vmatpush2.msra.mxu0 0.0
  %598 = vmatprep.subr.mxu0 0.0
  %599 = vmatpush2.msra.mxu0 0.0
  %600 = vmatprep.subr.mxu0 0.0
  %601 = vmatpush2.msra.mxu0 0.0
  %602 = vmatprep.subr.mxu0 0.0
  %603 = vmatpush2.msra.mxu0 0.0
  %604 = vmatprep.subr.mxu0 0.0
  %605 = vmatpush2.msra.mxu0 0.0
  %606 = vmatprep.subr.mxu0 0.0
  %607 = vmatpush2.msra.mxu0 0.0
  %608 = vmatprep.subr.mxu0 0.0
  %609 = vmatpush2.msra.mxu0 0.0
  %610 = vmatprep.subr.mxu0 0.0
  %611 = vmatpush2.msra.mxu0 0.0
  %612 = vmatprep.subr.mxu0 0.0
  %613 = vmatpush2.msra.mxu0 0.0
  %614 = vmatprep.subr.mxu0 0.0
  %615 = vmatpush2.msra.mxu0 0.0
  %616 = vmatprep.mubr.f32.mxu0 0.0
  %617 = vmatmul.mubr.f32.gmra.mxu0 %v547
  %v618 = vpop.f32.mrf.mxu0
  %v619 = vadd.f32 0.0, %v618
  %v620 = vpop.f32.mrf.mxu0
  %621 = vmatprep.mubr.f32.mxu0 0.0
  %622 = vmatmul.mubr.f32.gmra.mxu0 %v550
  %v623 = vpop.f32.mrf.mxu0
  %v624 = vadd.f32 0.0, %v623
  %v625 = vpop.f32.mrf.mxu0
  %626 = vdwg.mxu0
  %v627 = vsub.f32 %v375, %v619
  %v628 = vsub.f32 %v380, %v624
  %v630 = vsel %vm202, %v627, 0
  %v633 = vsel %vm202, %v628, 0
  %635 = vmatprep.subr.mxu0 0.0
  %636 = vmatpush1.msra.mxu0 0.0
  %637 = vmatprep.subr.mxu0 0.0
  %638 = vmatpush1.msra.mxu0 0.0
  %639 = vmatprep.subr.mxu0 0.0
  %640 = vmatpush1.msra.mxu0 0.0
  %641 = vmatprep.subr.mxu0 0.0
  %642 = vmatpush1.msra.mxu0 0.0
  %643 = vmatprep.subr.mxu0 0.0
  %644 = vmatpush1.msra.mxu0 0.0
  %645 = vmatprep.subr.mxu0 0.0
  %646 = vmatpush1.msra.mxu0 0.0
  %647 = vmatprep.subr.mxu0 0.0
  %648 = vmatpush1.msra.mxu0 0.0
  %649 = vmatprep.subr.mxu0 0.0
  %650 = vmatpush1.msra.mxu0 0.0
  %651 = vmatprep.subr.mxu0 0.0
  %652 = vmatpush1.msra.mxu0 0.0
  %653 = vmatprep.subr.mxu0 0.0
  %654 = vmatpush1.msra.mxu0 0.0
  %655 = vmatprep.subr.mxu0 0.0
  %656 = vmatpush1.msra.mxu0 0.0
  %657 = vmatprep.subr.mxu0 0.0
  %658 = vmatpush1.msra.mxu0 0.0
  %659 = vmatprep.subr.mxu0 0.0
  %660 = vmatpush1.msra.mxu0 0.0
  %661 = vmatprep.subr.mxu0 0.0
  %662 = vmatpush1.msra.mxu0 0.0
  %663 = vmatprep.subr.mxu0 0.0
  %664 = vmatpush1.msra.mxu0 %v545
  %665 = vmatprep.subr.mxu0 0.0
  %666 = vmatpush1.msra.mxu0 %v544
  %667 = vmatprep.subr.mxu0 0.0
  %668 = vmatpush2.msra.mxu0 0.0
  %669 = vmatprep.subr.mxu0 0.0
  %670 = vmatpush2.msra.mxu0 0.0
  %671 = vmatprep.subr.mxu0 0.0
  %672 = vmatpush2.msra.mxu0 0.0
  %673 = vmatprep.subr.mxu0 0.0
  %674 = vmatpush2.msra.mxu0 0.0
  %675 = vmatprep.subr.mxu0 0.0
  %676 = vmatpush2.msra.mxu0 0.0
  %677 = vmatprep.subr.mxu0 0.0
  %678 = vmatpush2.msra.mxu0 0.0
  %679 = vmatprep.subr.mxu0 0.0
  %680 = vmatpush2.msra.mxu0 0.0
  %681 = vmatprep.subr.mxu0 0.0
  %682 = vmatpush2.msra.mxu0 0.0
  %683 = vmatprep.subr.mxu0 0.0
  %684 = vmatpush2.msra.mxu0 0.0
  %685 = vmatprep.subr.mxu0 0.0
  %686 = vmatpush2.msra.mxu0 0.0
  %687 = vmatprep.subr.mxu0 0.0
  %688 = vmatpush2.msra.mxu0 0.0
  %689 = vmatprep.subr.mxu0 0.0
  %690 = vmatpush2.msra.mxu0 0.0
  %691 = vmatprep.subr.mxu0 0.0
  %692 = vmatpush2.msra.mxu0 0.0
  %693 = vmatprep.subr.mxu0 0.0
  %694 = vmatpush2.msra.mxu0 0.0
  %695 = vmatprep.subr.mxu0 0.0
  %696 = vmatpush2.msra.mxu0 0.0
  %697 = vmatprep.subr.mxu0 0.0
  %698 = vmatpush2.msra.mxu0 0.0
  %699 = vmatprep.mubr.f32.mxu0 0.0
  %700 = vmatmul.mubr.f32.gmra.mxu0 %v630
  %v701 = vpop.f32.mrf.mxu0
  %v702 = vadd.f32 0.0, %v701
  %v703 = vpop.f32.mrf.mxu0
  %704 = vmatprep.mubr.f32.mxu0 0.0
  %705 = vmatmul.mubr.f32.gmra.mxu0 %v633
  %v706 = vpop.f32.mrf.mxu0
  %v707 = vadd.f32 0.0, %v706
  %v708 = vpop.f32.mrf.mxu0
  %709 = vdwg.mxu0
  %v710 = vand.u32 2147483647, %v702
  %v711 = vand.u32 2147483647, %v707
  %v712 = vsel %vm230, %v710, 0.0
  %v713 = vsel %vm230, %v711, 0.0
  %v714 = vadd.f32 %v712, %v713
  %v715 = vrot.slane %v714, 4
  %v716 = vadd.f32 %v714, %v715
  %v717 = vrot.slane %v716, 2
  %v718 = vadd.f32 %v716, %v717
  %v719 = vrot.slane %v718, 1
  %v720 = vadd.f32 %v718, %v719
  %v721 = vmul.f32 %v720, %v240
  %v722 = vsub.f32 %v710, %v721
  %v723 = vsub.f32 %v711, %v721
  %v724 = vmul.f32 %v722, %v722
  %v725 = vmul.f32 %v723, %v723
  %v726 = vmul.f32 %v724, %v722
  %v727 = vmul.f32 %v725, %v723
  %v728 = vmul.f32 %v724, %v724
  %v729 = vmul.f32 %v725, %v725
  %v730 = vsel %vm230, %v724, 0.0
  %v731 = vsel %vm230, %v725, 0.0
  %v732 = vadd.f32 %v730, %v731
  %v733 = vrot.slane %v732, 4
  %v734 = vadd.f32 %v732, %v733
  %v735 = vrot.slane %v734, 2
  %v736 = vadd.f32 %v734, %v735
  %v737 = vrot.slane %v736, 1
  %v738 = vadd.f32 %v736, %v737
  %v739 = vmul.f32 %v738, %v240
  %v740 = vsel %vm230, %v726, 0.0
  %v741 = vsel %vm230, %v727, 0.0
  %v742 = vadd.f32 %v740, %v741
  %v743 = vrot.slane %v742, 4
  %v744 = vadd.f32 %v742, %v743
  %v745 = vrot.slane %v744, 2
  %v746 = vadd.f32 %v744, %v745
  %v747 = vrot.slane %v746, 1
  %v748 = vadd.f32 %v746, %v747
  %v749 = vmul.f32 %v748, %v240
  %v750 = vsel %vm230, %v728, 0.0
  %v751 = vsel %vm230, %v729, 0.0
  %v752 = vadd.f32 %v750, %v751
  %v753 = vrot.slane %v752, 4
  %v754 = vadd.f32 %v752, %v753
  %v755 = vrot.slane %v754, 2
  %v756 = vadd.f32 %v754, %v755
  %v757 = vrot.slane %v756, 1
  %v758 = vadd.f32 %v756, %v757
  %v759 = vmul.f32 %v758, %v240
  %v760 = vrsqrt.pop %v739
  %v761 = vmul.f32 %v739, %v760
  %vm762 = vcmp.eq.f32.partialorder %v739, inf
  %v763 = vsel %vm762, %v739, %v761
  %vm764 = vcmp.eq.f32.partialorder %v739, 0.0
  %v765 = vand.u32 %v739, 2147483648
  %v766 = vsel %vm764, %v765, %v763
  %v767 = vmul.f32 %v739, %v766
  %v768 = vrcp.pop %v767
  %v769 = vmul.f32 %v749, %v768
  %v770 = vmul.f32 %v769, 15.491934
  %v771 = vmul.f32 %v770, %v291
  %v772 = vmul.f32 %v739, %v739
  %v773 = vrcp.pop %v772
  %v774 = vmul.f32 %v759, %v773
  %v775 = vsub.f32 %v774, 3.0
  %v776 = vmul.f32 %v775, 17.0
  %v777 = vadd.f32 %v776, 6.0
  %v778 = vmul.f32 %v777, 15.0
  %v779 = vmul.f32 %v778, %v300
  %vm780 = vcmask 130112
  %v781 = vsel %vm780, %v710, 0.0
  %v782 = vsel %vm780, %v711, 0.0
  %v783 = vadd.f32 %v781, %v782
  %v784 = vrot.slane %v783, 4
  %v785 = vadd.f32 %v783, %v784
  %v786 = vrot.slane %v785, 2
  %v787 = vadd.f32 %v785, %v786
  %v788 = vrot.slane %v787, 1
  %v789 = vadd.f32 %v787, %v788
  %v790 = vmul.f32 %v789, %v240
  %v791 = vsub.f32 %v710, %v790
  %v792 = vsub.f32 %v711, %v790
  %v793 = vmul.f32 %v791, %v791
  %v794 = vmul.f32 %v792, %v792
  %v795 = vmul.f32 %v793, %v791
  %v796 = vmul.f32 %v794, %v792
  %v797 = vmul.f32 %v793, %v793
  %v798 = vmul.f32 %v794, %v794
  %v799 = vsel %vm780, %v793, 0.0
  %v800 = vsel %vm780, %v794, 0.0
  %v801 = vadd.f32 %v799, %v800
  %v802 = vrot.slane %v801, 4
  %v803 = vadd.f32 %v801, %v802
  %v804 = vrot.slane %v803, 2
  %v805 = vadd.f32 %v803, %v804
  %v806 = vrot.slane %v805, 1
  %v807 = vadd.f32 %v805, %v806
  %v808 = vmul.f32 %v807, %v240
  %v809 = vsel %vm780, %v795, 0.0
  %v810 = vsel %vm780, %v796, 0.0
  %v811 = vadd.f32 %v809, %v810
  %v812 = vrot.slane %v811, 4
  %v813 = vadd.f32 %v811, %v812
  %v814 = vrot.slane %v813, 2
  %v815 = vadd.f32 %v813, %v814
  %v816 = vrot.slane %v815, 1
  %v817 = vadd.f32 %v815, %v816
  %v818 = vmul.f32 %v817, %v240
  %v819 = vsel %vm780, %v797, 0.0
  %v820 = vsel %vm780, %v798, 0.0
  %v821 = vadd.f32 %v819, %v820
  %v822 = vrot.slane %v821, 4
  %v823 = vadd.f32 %v821, %v822
  %v824 = vrot.slane %v823, 2
  %v825 = vadd.f32 %v823, %v824
  %v826 = vrot.slane %v825, 1
  %v827 = vadd.f32 %v825, %v826
  %v828 = vmul.f32 %v827, %v240
  %v829 = vrsqrt.pop %v808
  %v830 = vmul.f32 %v808, %v829
  %vm831 = vcmp.eq.f32.partialorder %v808, inf
  %v832 = vsel %vm831, %v808, %v830
  %vm833 = vcmp.eq.f32.partialorder %v808, 0.0
  %v834 = vand.u32 %v808, 2147483648
  %v835 = vsel %vm833, %v834, %v832
  %v836 = vmul.f32 %v808, %v835
  %v837 = vrcp.pop %v836
  %v838 = vmul.f32 %v818, %v837
  %v839 = vmul.f32 %v838, 15.491934
  %v840 = vmul.f32 %v839, %v291
  %v841 = vmul.f32 %v808, %v808
  %v842 = vrcp.pop %v841
  %v843 = vmul.f32 %v828, %v842
  %v844 = vsub.f32 %v843, 3.0
  %v845 = vmul.f32 %v844, 17.0
  %v846 = vadd.f32 %v845, 6.0
  %v847 = vmul.f32 %v846, 15.0
  %v848 = vmul.f32 %v847, %v300
  %851 = vrot.lane.b32.xlu0 %v710, 16
  %v852 = vpop.permute.xlu0 %851
  %853 = vrot.lane.b32.xlu0 %v711, 16
  %v854 = vpop.permute.xlu0 %853
  %v857 = vsel %vm202, %v544, %v852
  %v858 = vsel %vm202, %v545, %v854
  %v860 = vsel %vm202, %v619, 0
  %v863 = vsel %vm202, %v624, 0
  %865 = vmatprep.subr.mxu0 0.0
  %866 = vmatpush1.msra.mxu0 0.0
  %867 = vmatprep.subr.mxu0 0.0
  %868 = vmatpush1.msra.mxu0 0.0
  %869 = vmatprep.subr.mxu0 0.0
  %870 = vmatpush1.msra.mxu0 0.0
  %871 = vmatprep.subr.mxu0 0.0
  %872 = vmatpush1.msra.mxu0 0.0
  %873 = vmatprep.subr.mxu0 0.0
  %874 = vmatpush1.msra.mxu0 0.0
  %875 = vmatprep.subr.mxu0 0.0
  %876 = vmatpush1.msra.mxu0 0.0
  %877 = vmatprep.subr.mxu0 0.0
  %878 = vmatpush1.msra.mxu0 0.0
  %879 = vmatprep.subr.mxu0 0.0
  %880 = vmatpush1.msra.mxu0 0.0
  %881 = vmatprep.subr.mxu0 0.0
  %882 = vmatpush1.msra.mxu0 0.0
  %883 = vmatprep.subr.mxu0 0.0
  %884 = vmatpush1.msra.mxu0 0.0
  %885 = vmatprep.subr.mxu0 0.0
  %886 = vmatpush1.msra.mxu0 0.0
  %887 = vmatprep.subr.mxu0 0.0
  %888 = vmatpush1.msra.mxu0 0.0
  %889 = vmatprep.subr.mxu0 0.0
  %890 = vmatpush1.msra.mxu0 0.0
  %891 = vmatprep.subr.mxu0 0.0
  %892 = vmatpush1.msra.mxu0 0.0
  %893 = vmatprep.subr.mxu0 0.0
  %894 = vmatpush1.msra.mxu0 %v624
  %895 = vmatprep.subr.mxu0 0.0
  %896 = vmatpush1.msra.mxu0 %v619
  %897 = vmatprep.subr.mxu0 0.0
  %898 = vmatpush2.msra.mxu0 0.0
  %899 = vmatprep.subr.mxu0 0.0
  %900 = vmatpush2.msra.mxu0 0.0
  %901 = vmatprep.subr.mxu0 0.0
  %902 = vmatpush2.msra.mxu0 0.0
  %903 = vmatprep.subr.mxu0 0.0
  %904 = vmatpush2.msra.mxu0 0.0
  %905 = vmatprep.subr.mxu0 0.0
  %906 = vmatpush2.msra.mxu0 0.0
  %907 = vmatprep.subr.mxu0 0.0
  %908 = vmatpush2.msra.mxu0 0.0
  %909 = vmatprep.subr.mxu0 0.0
  %910 = vmatpush2.msra.mxu0 0.0
  %911 = vmatprep.subr.mxu0 0.0
  %912 = vmatpush2.msra.mxu0 0.0
  %913 = vmatprep.subr.mxu0 0.0
  %914 = vmatpush2.msra.mxu0 0.0
  %915 = vmatprep.subr.mxu0 0.0
  %916 = vmatpush2.msra.mxu0 0.0
  %917 = vmatprep.subr.mxu0 0.0
  %918 = vmatpush2.msra.mxu0 0.0
  %919 = vmatprep.subr.mxu0 0.0
  %920 = vmatpush2.msra.mxu0 0.0
  %921 = vmatprep.subr.mxu0 0.0
  %922 = vmatpush2.msra.mxu0 0.0
  %923 = vmatprep.subr.mxu0 0.0
  %924 = vmatpush2.msra.mxu0 0.0
  %925 = vmatprep.subr.mxu0 0.0
  %926 = vmatpush2.msra.mxu0 0.0
  %927 = vmatprep.subr.mxu0 0.0
  %928 = vmatpush2.msra.mxu0 0.0
  %929 = vmatprep.mubr.f32.mxu0 0.0
  %930 = vmatmul.mubr.f32.gmra.mxu0 %v860
  %v931 = vpop.f32.mrf.mxu0
  %v932 = vadd.f32 0.0, %v931
  %v933 = vpop.f32.mrf.mxu0
  %934 = vmatprep.mubr.f32.mxu0 0.0
  %935 = vmatmul.mubr.f32.gmra.mxu0 %v863
  %v936 = vpop.f32.mrf.mxu0
  %v937 = vadd.f32 0.0, %v936
  %v938 = vpop.f32.mrf.mxu0
  %939 = vdwg.mxu0
  %v940 = vsub.f32 %v619, %v932
  %v941 = vsub.f32 %v624, %v937
  %v943 = vsel %vm202, %v940, 0
  %v946 = vsel %vm202, %v941, 0
  %948 = vmatprep.subr.mxu0 0.0
  %949 = vmatpush1.msra.mxu0 0.0
  %950 = vmatprep.subr.mxu0 0.0
  %951 = vmatpush1.msra.mxu0 0.0
  %952 = vmatprep.subr.mxu0 0.0
  %953 = vmatpush1.msra.mxu0 0.0
  %954 = vmatprep.subr.mxu0 0.0
  %955 = vmatpush1.msra.mxu0 0.0
  %956 = vmatprep.subr.mxu0 0.0
  %957 = vmatpush1.msra.mxu0 0.0
  %958 = vmatprep.subr.mxu0 0.0
  %959 = vmatpush1.msra.mxu0 0.0
  %960 = vmatprep.subr.mxu0 0.0
  %961 = vmatpush1.msra.mxu0 0.0
  %962 = vmatprep.subr.mxu0 0.0
  %963 = vmatpush1.msra.mxu0 0.0
  %964 = vmatprep.subr.mxu0 0.0
  %965 = vmatpush1.msra.mxu0 0.0
  %966 = vmatprep.subr.mxu0 0.0
  %967 = vmatpush1.msra.mxu0 0.0
  %968 = vmatprep.subr.mxu0 0.0
  %969 = vmatpush1.msra.mxu0 0.0
  %970 = vmatprep.subr.mxu0 0.0
  %971 = vmatpush1.msra.mxu0 0.0
  %972 = vmatprep.subr.mxu0 0.0
  %973 = vmatpush1.msra.mxu0 0.0
  %974 = vmatprep.subr.mxu0 0.0
  %975 = vmatpush1.msra.mxu0 0.0
  %976 = vmatprep.subr.mxu0 0.0
  %977 = vmatpush1.msra.mxu0 %v858
  %978 = vmatprep.subr.mxu0 0.0
  %979 = vmatpush1.msra.mxu0 %v857
  %980 = vmatprep.subr.mxu0 0.0
  %981 = vmatpush2.msra.mxu0 0.0
  %982 = vmatprep.subr.mxu0 0.0
  %983 = vmatpush2.msra.mxu0 0.0
  %984 = vmatprep.subr.mxu0 0.0
  %985 = vmatpush2.msra.mxu0 0.0
  %986 = vmatprep.subr.mxu0 0.0
  %987 = vmatpush2.msra.mxu0 0.0
  %988 = vmatprep.subr.mxu0 0.0
  %989 = vmatpush2.msra.mxu0 0.0
  %990 = vmatprep.subr.mxu0 0.0
  %991 = vmatpush2.msra.mxu0 0.0
  %992 = vmatprep.subr.mxu0 0.0
  %993 = vmatpush2.msra.mxu0 0.0
  %994 = vmatprep.subr.mxu0 0.0
  %995 = vmatpush2.msra.mxu0 0.0
  %996 = vmatprep.subr.mxu0 0.0
  %997 = vmatpush2.msra.mxu0 0.0
  %998 = vmatprep.subr.mxu0 0.0
  %999 = vmatpush2.msra.mxu0 0.0
  %1000 = vmatprep.subr.mxu0 0.0
  %1001 = vmatpush2.msra.mxu0 0.0
  %1002 = vmatprep.subr.mxu0 0.0
  %1003 = vmatpush2.msra.mxu0 0.0
  %1004 = vmatprep.subr.mxu0 0.0
  %1005 = vmatpush2.msra.mxu0 0.0
  %1006 = vmatprep.subr.mxu0 0.0
  %1007 = vmatpush2.msra.mxu0 0.0
  %1008 = vmatprep.subr.mxu0 0.0
  %1009 = vmatpush2.msra.mxu0 0.0
  %1010 = vmatprep.subr.mxu0 0.0
  %1011 = vmatpush2.msra.mxu0 0.0
  %1012 = vmatprep.mubr.f32.mxu0 0.0
  %1013 = vmatmul.mubr.f32.gmra.mxu0 %v943
  %v1014 = vpop.f32.mrf.mxu0
  %v1015 = vadd.f32 0.0, %v1014
  %v1016 = vpop.f32.mrf.mxu0
  %1017 = vmatprep.mubr.f32.mxu0 0.0
  %1018 = vmatmul.mubr.f32.gmra.mxu0 %v946
  %v1019 = vpop.f32.mrf.mxu0
  %v1020 = vadd.f32 0.0, %v1019
  %v1021 = vpop.f32.mrf.mxu0
  %1022 = vdwg.mxu0
  %v1023 = vand.u32 2147483647, %v1015
  %v1024 = vand.u32 2147483647, %v1020
  %v1025 = vsel %vm230, %v1023, 0.0
  %v1026 = vsel %vm230, %v1024, 0.0
  %v1027 = vadd.f32 %v1025, %v1026
  %v1028 = vrot.slane %v1027, 4
  %v1029 = vadd.f32 %v1027, %v1028
  %v1030 = vrot.slane %v1029, 2
  %v1031 = vadd.f32 %v1029, %v1030
  %v1032 = vrot.slane %v1031, 1
  %v1033 = vadd.f32 %v1031, %v1032
  %v1034 = vmul.f32 %v1033, %v240
  %v1035 = vsub.f32 %v1023, %v1034
  %v1036 = vsub.f32 %v1024, %v1034
  %v1037 = vmul.f32 %v1035, %v1035
  %v1038 = vmul.f32 %v1036, %v1036
  %v1039 = vmul.f32 %v1037, %v1035
  %v1040 = vmul.f32 %v1038, %v1036
  %v1041 = vmul.f32 %v1037, %v1037
  %v1042 = vmul.f32 %v1038, %v1038
  %v1043 = vsel %vm230, %v1037, 0.0
  %v1044 = vsel %vm230, %v1038, 0.0
  %v1045 = vadd.f32 %v1043, %v1044
  %v1046 = vrot.slane %v1045, 4
  %v1047 = vadd.f32 %v1045, %v1046
  %v1048 = vrot.slane %v1047, 2
  %v1049 = vadd.f32 %v1047, %v1048
  %v1050 = vrot.slane %v1049, 1
  %v1051 = vadd.f32 %v1049, %v1050
  %v1052 = vmul.f32 %v1051, %v240
  %v1053 = vsel %vm230, %v1039, 0.0
  %v1054 = vsel %vm230, %v1040, 0.0
  %v1055 = vadd.f32 %v1053, %v1054
  %v1056 = vrot.slane %v1055, 4
  %v1057 = vadd.f32 %v1055, %v1056
  %v1058 = vrot.slane %v1057, 2
  %v1059 = vadd.f32 %v1057, %v1058
  %v1060 = vrot.slane %v1059, 1
  %v1061 = vadd.f32 %v1059, %v1060
  %v1062 = vmul.f32 %v1061, %v240
  %v1063 = vsel %vm230, %v1041, 0.0
  %v1064 = vsel %vm230, %v1042, 0.0
  %v1065 = vadd.f32 %v1063, %v1064
  %v1066 = vrot.slane %v1065, 4
  %v1067 = vadd.f32 %v1065, %v1066
  %v1068 = vrot.slane %v1067, 2
  %v1069 = vadd.f32 %v1067, %v1068
  %v1070 = vrot.slane %v1069, 1
  %v1071 = vadd.f32 %v1069, %v1070
  %v1072 = vmul.f32 %v1071, %v240
  %v1073 = vrsqrt.pop %v1052
  %v1074 = vmul.f32 %v1052, %v1073
  %vm1075 = vcmp.eq.f32.partialorder %v1052, inf
  %v1076 = vsel %vm1075, %v1052, %v1074
  %vm1077 = vcmp.eq.f32.partialorder %v1052, 0.0
  %v1078 = vand.u32 %v1052, 2147483648
  %v1079 = vsel %vm1077, %v1078, %v1076
  %v1080 = vmul.f32 %v1052, %v1079
  %v1081 = vrcp.pop %v1080
  %v1082 = vmul.f32 %v1062, %v1081
  %v1083 = vmul.f32 %v1082, 15.491934
  %v1084 = vmul.f32 %v1083, %v291
  %v1085 = vmul.f32 %v1052, %v1052
  %v1086 = vrcp.pop %v1085
  %v1087 = vmul.f32 %v1072, %v1086
  %v1088 = vsub.f32 %v1087, 3.0
  %v1089 = vmul.f32 %v1088, 17.0
  %v1090 = vadd.f32 %v1089, 6.0
  %v1091 = vmul.f32 %v1090, 15.0
  %v1092 = vmul.f32 %v1091, %v300
  %v1093 = vsel %vm780, %v1023, 0.0
  %v1094 = vsel %vm780, %v1024, 0.0
  %v1095 = vadd.f32 %v1093, %v1094
  %v1096 = vrot.slane %v1095, 4
  %v1097 = vadd.f32 %v1095, %v1096
  %v1098 = vrot.slane %v1097, 2
  %v1099 = vadd.f32 %v1097, %v1098
  %v1100 = vrot.slane %v1099, 1
  %v1101 = vadd.f32 %v1099, %v1100
  %v1102 = vmul.f32 %v1101, %v240
  %v1103 = vsub.f32 %v1023, %v1102
  %v1104 = vsub.f32 %v1024, %v1102
  %v1105 = vmul.f32 %v1103, %v1103
  %v1106 = vmul.f32 %v1104, %v1104
  %v1107 = vmul.f32 %v1105, %v1103
  %v1108 = vmul.f32 %v1106, %v1104
  %v1109 = vmul.f32 %v1105, %v1105
  %v1110 = vmul.f32 %v1106, %v1106
  %v1111 = vsel %vm780, %v1105, 0.0
  %v1112 = vsel %vm780, %v1106, 0.0
  %v1113 = vadd.f32 %v1111, %v1112
  %v1114 = vrot.slane %v1113, 4
  %v1115 = vadd.f32 %v1113, %v1114
  %v1116 = vrot.slane %v1115, 2
  %v1117 = vadd.f32 %v1115, %v1116
  %v1118 = vrot.slane %v1117, 1
  %v1119 = vadd.f32 %v1117, %v1118
  %v1120 = vmul.f32 %v1119, %v240
  %v1121 = vsel %vm780, %v1107, 0.0
  %v1122 = vsel %vm780, %v1108, 0.0
  %v1123 = vadd.f32 %v1121, %v1122
  %v1124 = vrot.slane %v1123, 4
  %v1125 = vadd.f32 %v1123, %v1124
  %v1126 = vrot.slane %v1125, 2
  %v1127 = vadd.f32 %v1125, %v1126
  %v1128 = vrot.slane %v1127, 1
  %v1129 = vadd.f32 %v1127, %v1128
  %v1130 = vmul.f32 %v1129, %v240
  %v1131 = vsel %vm780, %v1109, 0.0
  %v1132 = vsel %vm780, %v1110, 0.0
  %v1133 = vadd.f32 %v1131, %v1132
  %v1134 = vrot.slane %v1133, 4
  %v1135 = vadd.f32 %v1133, %v1134
  %v1136 = vrot.slane %v1135, 2
  %v1137 = vadd.f32 %v1135, %v1136
  %v1138 = vrot.slane %v1137, 1
  %v1139 = vadd.f32 %v1137, %v1138
  %v1140 = vmul.f32 %v1139, %v240
  %v1141 = vrsqrt.pop %v1120
  %v1142 = vmul.f32 %v1120, %v1141
  %vm1143 = vcmp.eq.f32.partialorder %v1120, inf
  %v1144 = vsel %vm1143, %v1120, %v1142
  %vm1145 = vcmp.eq.f32.partialorder %v1120, 0.0
  %v1146 = vand.u32 %v1120, 2147483648
  %v1147 = vsel %vm1145, %v1146, %v1144
  %v1148 = vmul.f32 %v1120, %v1147
  %v1149 = vrcp.pop %v1148
  %v1150 = vmul.f32 %v1130, %v1149
  %v1151 = vmul.f32 %v1150, 15.491934
  %v1152 = vmul.f32 %v1151, %v291
  %v1153 = vmul.f32 %v1120, %v1120
  %v1154 = vrcp.pop %v1153
  %v1155 = vmul.f32 %v1140, %v1154
  %v1156 = vsub.f32 %v1155, 3.0
  %v1157 = vmul.f32 %v1156, 17.0
  %v1158 = vadd.f32 %v1157, 6.0
  %v1159 = vmul.f32 %v1158, 15.0
  %v1160 = vmul.f32 %v1159, %v300
  %vm1161 = vcmask 195712
  %v1162 = vsel %vm1161, %v1023, 0.0
  %v1163 = vsel %vm1161, %v1024, 0.0
  %v1164 = vadd.f32 %v1162, %v1163
  %v1165 = vrot.slane %v1164, 4
  %v1166 = vadd.f32 %v1164, %v1165
  %v1167 = vrot.slane %v1166, 2
  %v1168 = vadd.f32 %v1166, %v1167
  %v1169 = vrot.slane %v1168, 1
  %v1170 = vadd.f32 %v1168, %v1169
  %v1171 = vmul.f32 %v1170, %v240
  %v1172 = vsub.f32 %v1023, %v1171
  %v1173 = vsub.f32 %v1024, %v1171
  %v1174 = vmul.f32 %v1172, %v1172
  %v1175 = vmul.f32 %v1173, %v1173
  %v1176 = vmul.f32 %v1174, %v1172
  %v1177 = vmul.f32 %v1175, %v1173
  %v1178 = vmul.f32 %v1174, %v1174
  %v1179 = vmul.f32 %v1175, %v1175
  %v1180 = vsel %vm1161, %v1174, 0.0
  %v1181 = vsel %vm1161, %v1175, 0.0
  %v1182 = vadd.f32 %v1180, %v1181
  %v1183 = vrot.slane %v1182, 4
  %v1184 = vadd.f32 %v1182, %v1183
  %v1185 = vrot.slane %v1184, 2
  %v1186 = vadd.f32 %v1184, %v1185
  %v1187 = vrot.slane %v1186, 1
  %v1188 = vadd.f32 %v1186, %v1187
  %v1189 = vmul.f32 %v1188, %v240
  %v1190 = vsel %vm1161, %v1176, 0.0
  %v1191 = vsel %vm1161, %v1177, 0.0
  %v1192 = vadd.f32 %v1190, %v1191
  %v1193 = vrot.slane %v1192, 4
  %v1194 = vadd.f32 %v1192, %v1193
  %v1195 = vrot.slane %v1194, 2
  %v1196 = vadd.f32 %v1194, %v1195
  %v1197 = vrot.slane %v1196, 1
  %v1198 = vadd.f32 %v1196, %v1197
  %v1199 = vmul.f32 %v1198, %v240
  %v1200 = vsel %vm1161, %v1178, 0.0
  %v1201 = vsel %vm1161, %v1179, 0.0
  %v1202 = vadd.f32 %v1200, %v1201
  %v1203 = vrot.slane %v1202, 4
  %v1204 = vadd.f32 %v1202, %v1203
  %v1205 = vrot.slane %v1204, 2
  %v1206 = vadd.f32 %v1204, %v1205
  %v1207 = vrot.slane %v1206, 1
  %v1208 = vadd.f32 %v1206, %v1207
  %v1209 = vmul.f32 %v1208, %v240
  %v1210 = vrsqrt.pop %v1189
  %v1211 = vmul.f32 %v1189, %v1210
  %vm1212 = vcmp.eq.f32.partialorder %v1189, inf
  %v1213 = vsel %vm1212, %v1189, %v1211
  %vm1214 = vcmp.eq.f32.partialorder %v1189, 0.0
  %v1215 = vand.u32 %v1189, 2147483648
  %v1216 = vsel %vm1214, %v1215, %v1213
  %v1217 = vmul.f32 %v1189, %v1216
  %v1218 = vrcp.pop %v1217
  %v1219 = vmul.f32 %v1199, %v1218
  %v1220 = vmul.f32 %v1219, 15.491934
  %v1221 = vmul.f32 %v1220, %v291
  %v1222 = vmul.f32 %v1189, %v1189
  %v1223 = vrcp.pop %v1222
  %v1224 = vmul.f32 %v1209, %v1223
  %v1225 = vsub.f32 %v1224, 3.0
  %v1226 = vmul.f32 %v1225, 17.0
  %v1227 = vadd.f32 %v1226, 6.0
  %v1228 = vmul.f32 %v1227, 15.0
  %v1229 = vmul.f32 %v1228, %v300
  %1232 = vrot.lane.b32.xlu0 %v1023, 24
  %v1233 = vpop.permute.xlu0 %1232
  %1234 = vrot.lane.b32.xlu0 %v1024, 24
  %v1235 = vpop.permute.xlu0 %1234
  %vm1238 = vcmask 195584
  %v1239 = vsel %vm1238, %v857, %v1233
  %v1240 = vsel %vm1238, %v858, %v1235
  %v1242 = vsel %vm202, %v932, 0
  %v1245 = vsel %vm202, %v937, 0
  %1247 = vmatprep.subr.mxu0 0.0
  %1248 = vmatpush1.msra.mxu0 0.0
  %1249 = vmatprep.subr.mxu0 0.0
  %1250 = vmatpush1.msra.mxu0 0.0
  %1251 = vmatprep.subr.mxu0 0.0
  %1252 = vmatpush1.msra.mxu0 0.0
  %1253 = vmatprep.subr.mxu0 0.0
  %1254 = vmatpush1.msra.mxu0 0.0
  %1255 = vmatprep.subr.mxu0 0.0
  %1256 = vmatpush1.msra.mxu0 0.0
  %1257 = vmatprep.subr.mxu0 0.0
  %1258 = vmatpush1.msra.mxu0 0.0
  %1259 = vmatprep.subr.mxu0 0.0
  %1260 = vmatpush1.msra.mxu0 0.0
  %1261 = vmatprep.subr.mxu0 0.0
  %1262 = vmatpush1.msra.mxu0 0.0
  %1263 = vmatprep.subr.mxu0 0.0
  %1264 = vmatpush1.msra.mxu0 0.0
  %1265 = vmatprep.subr.mxu0 0.0
  %1266 = vmatpush1.msra.mxu0 0.0
  %1267 = vmatprep.subr.mxu0 0.0
  %1268 = vmatpush1.msra.mxu0 0.0
  %1269 = vmatprep.subr.mxu0 0.0
  %1270 = vmatpush1.msra.mxu0 0.0
  %1271 = vmatprep.subr.mxu0 0.0
  %1272 = vmatpush1.msra.mxu0 0.0
  %1273 = vmatprep.subr.mxu0 0.0
  %1274 = vmatpush1.msra.mxu0 0.0
  %1275 = vmatprep.subr.mxu0 0.0
  %1276 = vmatpush1.msra.mxu0 %v937
  %1277 = vmatprep.subr.mxu0 0.0
  %1278 = vmatpush1.msra.mxu0 %v932
  %1279 = vmatprep.subr.mxu0 0.0
  %1280 = vmatpush2.msra.mxu0 0.0
  %1281 = vmatprep.subr.mxu0 0.0
  %1282 = vmatpush2.msra.mxu0 0.0
  %1283 = vmatprep.subr.mxu0 0.0
  %1284 = vmatpush2.msra.mxu0 0.0
  %1285 = vmatprep.subr.mxu0 0.0
  %1286 = vmatpush2.msra.mxu0 0.0
  %1287 = vmatprep.subr.mxu0 0.0
  %1288 = vmatpush2.msra.mxu0 0.0
  %1289 = vmatprep.subr.mxu0 0.0
  %1290 = vmatpush2.msra.mxu0 0.0
  %1291 = vmatprep.subr.mxu0 0.0
  %1292 = vmatpush2.msra.mxu0 0.0
  %1293 = vmatprep.subr.mxu0 0.0
  %1294 = vmatpush2.msra.mxu0 0.0
  %1295 = vmatprep.subr.mxu0 0.0
  %1296 = vmatpush2.msra.mxu0 0.0
  %1297 = vmatprep.subr.mxu0 0.0
  %1298 = vmatpush2.msra.mxu0 0.0
  %1299 = vmatprep.subr.mxu0 0.0
  %1300 = vmatpush2.msra.mxu0 0.0
  %1301 = vmatprep.subr.mxu0 0.0
  %1302 = vmatpush2.msra.mxu0 0.0
  %1303 = vmatprep.subr.mxu0 0.0
  %1304 = vmatpush2.msra.mxu0 0.0
  %1305 = vmatprep.subr.mxu0 0.0
  %1306 = vmatpush2.msra.mxu0 0.0
  %1307 = vmatprep.subr.mxu0 0.0
  %1308 = vmatpush2.msra.mxu0 0.0
  %1309 = vmatprep.subr.mxu0 0.0
  %1310 = vmatpush2.msra.mxu0 0.0
  %1311 = vmatprep.mubr.f32.mxu0 0.0
  %1312 = vmatmul.mubr.f32.gmra.mxu0 %v1242
  %v1313 = vpop.f32.mrf.mxu0
  %v1314 = vadd.f32 0.0, %v1313
  %v1315 = vpop.f32.mrf.mxu0
  %1316 = vmatprep.mubr.f32.mxu0 0.0
  %1317 = vmatmul.mubr.f32.gmra.mxu0 %v1245
  %v1318 = vpop.f32.mrf.mxu0
  %v1319 = vadd.f32 0.0, %v1318
  %v1320 = vpop.f32.mrf.mxu0
  %1321 = vdwg.mxu0
  %v1322 = vsub.f32 %v932, %v1314
  %v1323 = vsub.f32 %v937, %v1319
  %v1325 = vsel %vm202, %v1322, 0
  %v1328 = vsel %vm202, %v1323, 0
  %1330 = vmatprep.subr.mxu0 0.0
  %1331 = vmatpush1.msra.mxu0 0.0
  %1332 = vmatprep.subr.mxu0 0.0
  %1333 = vmatpush1.msra.mxu0 0.0
  %1334 = vmatprep.subr.mxu0 0.0
  %1335 = vmatpush1.msra.mxu0 0.0
  %1336 = vmatprep.subr.mxu0 0.0
  %1337 = vmatpush1.msra.mxu0 0.0
  %1338 = vmatprep.subr.mxu0 0.0
  %1339 = vmatpush1.msra.mxu0 0.0
  %1340 = vmatprep.subr.mxu0 0.0
  %1341 = vmatpush1.msra.mxu0 0.0
  %1342 = vmatprep.subr.mxu0 0.0
  %1343 = vmatpush1.msra.mxu0 0.0
  %1344 = vmatprep.subr.mxu0 0.0
  %1345 = vmatpush1.msra.mxu0 0.0
  %1346 = vmatprep.subr.mxu0 0.0
  %1347 = vmatpush1.msra.mxu0 0.0
  %1348 = vmatprep.subr.mxu0 0.0
  %1349 = vmatpush1.msra.mxu0 0.0
  %1350 = vmatprep.subr.mxu0 0.0
  %1351 = vmatpush1.msra.mxu0 0.0
  %1352 = vmatprep.subr.mxu0 0.0
  %1353 = vmatpush1.msra.mxu0 0.0
  %1354 = vmatprep.subr.mxu0 0.0
  %1355 = vmatpush1.msra.mxu0 0.0
  %1356 = vmatprep.subr.mxu0 0.0
  %1357 = vmatpush1.msra.mxu0 0.0
  %1358 = vmatprep.subr.mxu0 0.0
  %1359 = vmatpush1.msra.mxu0 %v1240
  %1360 = vmatprep.subr.mxu0 0.0
  %1361 = vmatpush1.msra.mxu0 %v1239
  %1362 = vmatprep.subr.mxu0 0.0
  %1363 = vmatpush2.msra.mxu0 0.0
  %1364 = vmatprep.subr.mxu0 0.0
  %1365 = vmatpush2.msra.mxu0 0.0
  %1366 = vmatprep.subr.mxu0 0.0
  %1367 = vmatpush2.msra.mxu0 0.0
  %1368 = vmatprep.subr.mxu0 0.0
  %1369 = vmatpush2.msra.mxu0 0.0
  %1370 = vmatprep.subr.mxu0 0.0
  %1371 = vmatpush2.msra.mxu0 0.0
  %1372 = vmatprep.subr.mxu0 0.0
  %1373 = vmatpush2.msra.mxu0 0.0
  %1374 = vmatprep.subr.mxu0 0.0
  %1375 = vmatpush2.msra.mxu0 0.0
  %1376 = vmatprep.subr.mxu0 0.0
  %1377 = vmatpush2.msra.mxu0 0.0
  %1378 = vmatprep.subr.mxu0 0.0
  %1379 = vmatpush2.msra.mxu0 0.0
  %1380 = vmatprep.subr.mxu0 0.0
  %1381 = vmatpush2.msra.mxu0 0.0
  %1382 = vmatprep.subr.mxu0 0.0
  %1383 = vmatpush2.msra.mxu0 0.0
  %1384 = vmatprep.subr.mxu0 0.0
  %1385 = vmatpush2.msra.mxu0 0.0
  %1386 = vmatprep.subr.mxu0 0.0
  %1387 = vmatpush2.msra.mxu0 0.0
  %1388 = vmatprep.subr.mxu0 0.0
  %1389 = vmatpush2.msra.mxu0 0.0
  %1390 = vmatprep.subr.mxu0 0.0
  %1391 = vmatpush2.msra.mxu0 0.0
  %1392 = vmatprep.subr.mxu0 0.0
  %1393 = vmatpush2.msra.mxu0 0.0
  %1394 = vmatprep.mubr.f32.mxu0 0.0
  %1395 = vmatmul.mubr.f32.gmra.mxu0 %v1325
  %v1396 = vpop.f32.mrf.mxu0
  %v1397 = vadd.f32 0.0, %v1396
  %v1398 = vpop.f32.mrf.mxu0
  %1399 = vmatprep.mubr.f32.mxu0 0.0
  %1400 = vmatmul.mubr.f32.gmra.mxu0 %v1328
  %v1401 = vpop.f32.mrf.mxu0
  %v1402 = vadd.f32 0.0, %v1401
  %v1403 = vpop.f32.mrf.mxu0
  %1404 = vdwg.mxu0
  %v1405 = vand.u32 2147483647, %v1397
  %v1406 = vand.u32 2147483647, %v1402
  %v1407 = vsel %vm230, %v1405, 0.0
  %v1408 = vsel %vm230, %v1406, 0.0
  %v1409 = vadd.f32 %v1407, %v1408
  %v1410 = vrot.slane %v1409, 4
  %v1411 = vadd.f32 %v1409, %v1410
  %v1412 = vrot.slane %v1411, 2
  %v1413 = vadd.f32 %v1411, %v1412
  %v1414 = vrot.slane %v1413, 1
  %v1415 = vadd.f32 %v1413, %v1414
  %v1416 = vmul.f32 %v1415, %v240
  %v1417 = vsub.f32 %v1405, %v1416
  %v1418 = vsub.f32 %v1406, %v1416
  %v1419 = vmul.f32 %v1417, %v1417
  %v1420 = vmul.f32 %v1418, %v1418
  %v1421 = vmul.f32 %v1419, %v1417
  %v1422 = vmul.f32 %v1420, %v1418
  %v1423 = vmul.f32 %v1419, %v1419
  %v1424 = vmul.f32 %v1420, %v1420
  %v1425 = vsel %vm230, %v1419, 0.0
  %v1426 = vsel %vm230, %v1420, 0.0
  %v1427 = vadd.f32 %v1425, %v1426
  %v1428 = vrot.slane %v1427, 4
  %v1429 = vadd.f32 %v1427, %v1428
  %v1430 = vrot.slane %v1429, 2
  %v1431 = vadd.f32 %v1429, %v1430
  %v1432 = vrot.slane %v1431, 1
  %v1433 = vadd.f32 %v1431, %v1432
  %v1434 = vmul.f32 %v1433, %v240
  %v1435 = vsel %vm230, %v1421, 0.0
  %v1436 = vsel %vm230, %v1422, 0.0
  %v1437 = vadd.f32 %v1435, %v1436
  %v1438 = vrot.slane %v1437, 4
  %v1439 = vadd.f32 %v1437, %v1438
  %v1440 = vrot.slane %v1439, 2
  %v1441 = vadd.f32 %v1439, %v1440
  %v1442 = vrot.slane %v1441, 1
  %v1443 = vadd.f32 %v1441, %v1442
  %v1444 = vmul.f32 %v1443, %v240
  %v1445 = vsel %vm230, %v1423, 0.0
  %v1446 = vsel %vm230, %v1424, 0.0
  %v1447 = vadd.f32 %v1445, %v1446
  %v1448 = vrot.slane %v1447, 4
  %v1449 = vadd.f32 %v1447, %v1448
  %v1450 = vrot.slane %v1449, 2
  %v1451 = vadd.f32 %v1449, %v1450
  %v1452 = vrot.slane %v1451, 1
  %v1453 = vadd.f32 %v1451, %v1452
  %v1454 = vmul.f32 %v1453, %v240
  %v1455 = vrsqrt.pop %v1434
  %v1456 = vmul.f32 %v1434, %v1455
  %vm1457 = vcmp.eq.f32.partialorder %v1434, inf
  %v1458 = vsel %vm1457, %v1434, %v1456
  %vm1459 = vcmp.eq.f32.partialorder %v1434, 0.0
  %v1460 = vand.u32 %v1434, 2147483648
  %v1461 = vsel %vm1459, %v1460, %v1458
  %v1462 = vmul.f32 %v1434, %v1461
  %v1463 = vrcp.pop %v1462
  %v1464 = vmul.f32 %v1444, %v1463
  %v1465 = vmul.f32 %v1464, 15.491934
  %v1466 = vmul.f32 %v1465, %v291
  %v1467 = vmul.f32 %v1434, %v1434
  %v1468 = vrcp.pop %v1467
  %v1469 = vmul.f32 %v1454, %v1468
  %v1470 = vsub.f32 %v1469, 3.0
  %v1471 = vmul.f32 %v1470, 17.0
  %v1472 = vadd.f32 %v1471, 6.0
  %v1473 = vmul.f32 %v1472, 15.0
  %v1474 = vmul.f32 %v1473, %v300
  %v1475 = vsel %vm780, %v1405, 0.0
  %v1476 = vsel %vm780, %v1406, 0.0
  %v1477 = vadd.f32 %v1475, %v1476
  %v1478 = vrot.slane %v1477, 4
  %v1479 = vadd.f32 %v1477, %v1478
  %v1480 = vrot.slane %v1479, 2
  %v1481 = vadd.f32 %v1479, %v1480
  %v1482 = vrot.slane %v1481, 1
  %v1483 = vadd.f32 %v1481, %v1482
  %v1484 = vmul.f32 %v1483, %v240
  %v1485 = vsub.f32 %v1405, %v1484
  %v1486 = vsub.f32 %v1406, %v1484
  %v1487 = vmul.f32 %v1485, %v1485
  %v1488 = vmul.f32 %v1486, %v1486
  %v1489 = vmul.f32 %v1487, %v1485
  %v1490 = vmul.f32 %v1488, %v1486
  %v1491 = vmul.f32 %v1487, %v1487
  %v1492 = vmul.f32 %v1488, %v1488
  %v1493 = vsel %vm780, %v1487, 0.0
  %v1494 = vsel %vm780, %v1488, 0.0
  %v1495 = vadd.f32 %v1493, %v1494
  %v1496 = vrot.slane %v1495, 4
  %v1497 = vadd.f32 %v1495, %v1496
  %v1498 = vrot.slane %v1497, 2
  %v1499 = vadd.f32 %v1497, %v1498
  %v1500 = vrot.slane %v1499, 1
  %v1501 = vadd.f32 %v1499, %v1500
  %v1502 = vmul.f32 %v1501, %v240
  %v1503 = vsel %vm780, %v1489, 0.0
  %v1504 = vsel %vm780, %v1490, 0.0
  %v1505 = vadd.f32 %v1503, %v1504
  %v1506 = vrot.slane %v1505, 4
  %v1507 = vadd.f32 %v1505, %v1506
  %v1508 = vrot.slane %v1507, 2
  %v1509 = vadd.f32 %v1507, %v1508
  %v1510 = vrot.slane %v1509, 1
  %v1511 = vadd.f32 %v1509, %v1510
  %v1512 = vmul.f32 %v1511, %v240
  %v1513 = vsel %vm780, %v1491, 0.0
  %v1514 = vsel %vm780, %v1492, 0.0
  %v1515 = vadd.f32 %v1513, %v1514
  %v1516 = vrot.slane %v1515, 4
  %v1517 = vadd.f32 %v1515, %v1516
  %v1518 = vrot.slane %v1517, 2
  %v1519 = vadd.f32 %v1517, %v1518
  %v1520 = vrot.slane %v1519, 1
  %v1521 = vadd.f32 %v1519, %v1520
  %v1522 = vmul.f32 %v1521, %v240
  %v1523 = vrsqrt.pop %v1502
  %v1524 = vmul.f32 %v1502, %v1523
  %vm1525 = vcmp.eq.f32.partialorder %v1502, inf
  %v1526 = vsel %vm1525, %v1502, %v1524
  %vm1527 = vcmp.eq.f32.partialorder %v1502, 0.0
  %v1528 = vand.u32 %v1502, 2147483648
  %v1529 = vsel %vm1527, %v1528, %v1526
  %v1530 = vmul.f32 %v1502, %v1529
  %v1531 = vrcp.pop %v1530
  %v1532 = vmul.f32 %v1512, %v1531
  %v1533 = vmul.f32 %v1532, 15.491934
  %v1534 = vmul.f32 %v1533, %v291
  %v1535 = vmul.f32 %v1502, %v1502
  %v1536 = vrcp.pop %v1535
  %v1537 = vmul.f32 %v1522, %v1536
  %v1538 = vsub.f32 %v1537, 3.0
  %v1539 = vmul.f32 %v1538, 17.0
  %v1540 = vadd.f32 %v1539, 6.0
  %v1541 = vmul.f32 %v1540, 15.0
  %v1542 = vmul.f32 %v1541, %v300
  %v1543 = vsel %vm1161, %v1405, 0.0
  %v1544 = vsel %vm1161, %v1406, 0.0
  %v1545 = vadd.f32 %v1543, %v1544
  %v1546 = vrot.slane %v1545, 4
  %v1547 = vadd.f32 %v1545, %v1546
  %v1548 = vrot.slane %v1547, 2
  %v1549 = vadd.f32 %v1547, %v1548
  %v1550 = vrot.slane %v1549, 1
  %v1551 = vadd.f32 %v1549, %v1550
  %v1552 = vmul.f32 %v1551, %v240
  %v1553 = vsub.f32 %v1405, %v1552
  %v1554 = vsub.f32 %v1406, %v1552
  %v1555 = vmul.f32 %v1553, %v1553
  %v1556 = vmul.f32 %v1554, %v1554
  %v1557 = vmul.f32 %v1555, %v1553
  %v1558 = vmul.f32 %v1556, %v1554
  %v1559 = vmul.f32 %v1555, %v1555
  %v1560 = vmul.f32 %v1556, %v1556
  %v1561 = vsel %vm1161, %v1555, 0.0
  %v1562 = vsel %vm1161, %v1556, 0.0
  %v1563 = vadd.f32 %v1561, %v1562
  %v1564 = vrot.slane %v1563, 4
  %v1565 = vadd.f32 %v1563, %v1564
  %v1566 = vrot.slane %v1565, 2
  %v1567 = vadd.f32 %v1565, %v1566
  %v1568 = vrot.slane %v1567, 1
  %v1569 = vadd.f32 %v1567, %v1568
  %v1570 = vmul.f32 %v1569, %v240
  %v1571 = vsel %vm1161, %v1557, 0.0
  %v1572 = vsel %vm1161, %v1558, 0.0
  %v1573 = vadd.f32 %v1571, %v1572
  %v1574 = vrot.slane %v1573, 4
  %v1575 = vadd.f32 %v1573, %v1574
  %v1576 = vrot.slane %v1575, 2
  %v1577 = vadd.f32 %v1575, %v1576
  %v1578 = vrot.slane %v1577, 1
  %v1579 = vadd.f32 %v1577, %v1578
  %v1580 = vmul.f32 %v1579, %v240
  %v1581 = vsel %vm1161, %v1559, 0.0
  %v1582 = vsel %vm1161, %v1560, 0.0
  %v1583 = vadd.f32 %v1581, %v1582
  %v1584 = vrot.slane %v1583, 4
  %v1585 = vadd.f32 %v1583, %v1584
  %v1586 = vrot.slane %v1585, 2
  %v1587 = vadd.f32 %v1585, %v1586
  %v1588 = vrot.slane %v1587, 1
  %v1589 = vadd.f32 %v1587, %v1588
  %v1590 = vmul.f32 %v1589, %v240
  %v1591 = vrsqrt.pop %v1570
  %v1592 = vmul.f32 %v1570, %v1591
  %vm1593 = vcmp.eq.f32.partialorder %v1570, inf
  %v1594 = vsel %vm1593, %v1570, %v1592
  %vm1595 = vcmp.eq.f32.partialorder %v1570, 0.0
  %v1596 = vand.u32 %v1570, 2147483648
  %v1597 = vsel %vm1595, %v1596, %v1594
  %v1598 = vmul.f32 %v1570, %v1597
  %v1599 = vrcp.pop %v1598
  %v1600 = vmul.f32 %v1580, %v1599
  %v1601 = vmul.f32 %v1600, 15.491934
  %v1602 = vmul.f32 %v1601, %v291
  %v1603 = vmul.f32 %v1570, %v1570
  %v1604 = vrcp.pop %v1603
  %v1605 = vmul.f32 %v1590, %v1604
  %v1606 = vsub.f32 %v1605, 3.0
  %v1607 = vmul.f32 %v1606, 17.0
  %v1608 = vadd.f32 %v1607, 6.0
  %v1609 = vmul.f32 %v1608, 15.0
  %v1610 = vmul.f32 %v1609, %v300
  %vm1611 = vcmask 261312
  %v1612 = vsel %vm1611, %v1405, 0.0
  %v1613 = vsel %vm1611, %v1406, 0.0
  %v1614 = vadd.f32 %v1612, %v1613
  %v1615 = vrot.slane %v1614, 4
  %v1616 = vadd.f32 %v1614, %v1615
  %v1617 = vrot.slane %v1616, 2
  %v1618 = vadd.f32 %v1616, %v1617
  %v1619 = vrot.slane %v1618, 1
  %v1620 = vadd.f32 %v1618, %v1619
  %v1621 = vmul.f32 %v1620, %v240
  %v1622 = vsub.f32 %v1405, %v1621
  %v1623 = vsub.f32 %v1406, %v1621
  %v1624 = vmul.f32 %v1622, %v1622
  %v1625 = vmul.f32 %v1623, %v1623
  %v1626 = vmul.f32 %v1624, %v1622
  %v1627 = vmul.f32 %v1625, %v1623
  %v1628 = vmul.f32 %v1624, %v1624
  %v1629 = vmul.f32 %v1625, %v1625
  %v1630 = vsel %vm1611, %v1624, 0.0
  %v1631 = vsel %vm1611, %v1625, 0.0
  %v1632 = vadd.f32 %v1630, %v1631
  %v1633 = vrot.slane %v1632, 4
  %v1634 = vadd.f32 %v1632, %v1633
  %v1635 = vrot.slane %v1634, 2
  %v1636 = vadd.f32 %v1634, %v1635
  %v1637 = vrot.slane %v1636, 1
  %v1638 = vadd.f32 %v1636, %v1637
  %v1639 = vmul.f32 %v1638, %v240
  %v1640 = vsel %vm1611, %v1626, 0.0
  %v1641 = vsel %vm1611, %v1627, 0.0
  %v1642 = vadd.f32 %v1640, %v1641
  %v1643 = vrot.slane %v1642, 4
  %v1644 = vadd.f32 %v1642, %v1643
  %v1645 = vrot.slane %v1644, 2
  %v1646 = vadd.f32 %v1644, %v1645
  %v1647 = vrot.slane %v1646, 1
  %v1648 = vadd.f32 %v1646, %v1647
  %v1649 = vmul.f32 %v1648, %v240
  %v1650 = vsel %vm1611, %v1628, 0.0
  %v1651 = vsel %vm1611, %v1629, 0.0
  %v1652 = vadd.f32 %v1650, %v1651
  %v1653 = vrot.slane %v1652, 4
  %v1654 = vadd.f32 %v1652, %v1653
  %v1655 = vrot.slane %v1654, 2
  %v1656 = vadd.f32 %v1654, %v1655
  %v1657 = vrot.slane %v1656, 1
  %v1658 = vadd.f32 %v1656, %v1657
  %v1659 = vmul.f32 %v1658, %v240
  %v1660 = vrsqrt.pop %v1639
  %v1661 = vmul.f32 %v1639, %v1660
  %vm1662 = vcmp.eq.f32.partialorder %v1639, inf
  %v1663 = vsel %vm1662, %v1639, %v1661
  %vm1664 = vcmp.eq.f32.partialorder %v1639, 0.0
  %v1665 = vand.u32 %v1639, 2147483648
  %v1666 = vsel %vm1664, %v1665, %v1663
  %v1667 = vmul.f32 %v1639, %v1666
  %v1668 = vrcp.pop %v1667
  %v1669 = vmul.f32 %v1649, %v1668
  %v1670 = vmul.f32 %v1669, 15.491934
  %v1671 = vmul.f32 %v1670, %v291
  %v1672 = vmul.f32 %v1639, %v1639
  %v1673 = vrcp.pop %v1672
  %v1674 = vmul.f32 %v1659, %v1673
  %v1675 = vsub.f32 %v1674, 3.0
  %v1676 = vmul.f32 %v1675, 17.0
  %v1677 = vadd.f32 %v1676, 6.0
  %v1678 = vmul.f32 %v1677, 15.0
  %v1679 = vmul.f32 %v1678, %v300
  %vm1680 = vcmask 1040384
  %v1681 = vsel %vm1680, %v241, %v259
  %vm1682 = vcmask 1041408
  %v1683 = vsel %vm1682, %v1681, %v292
  %vm1684 = vcmask 1042432
  %v1685 = vsel %vm1684, %v1683, %v301
  %vm1686 = vcmask 1043456
  %v1687 = vsel %vm1686, %v1685, %v477
  %vm1688 = vcmask 1044480
  %v1689 = vsel %vm1688, %v1687, %v721
  %vm1690 = vcmask 1045504
  %v1691 = vsel %vm1690, %v1689, %v1034
  %vm1692 = vcmask 1046528
  %v1693 = vsel %vm1692, %v1691, %v1416
  %v1694 = vsel %vm1680, %v495, %v739
  %v1695 = vsel %vm1682, %v1694, %v1052
  %v1696 = vsel %vm1684, %v1695, %v1434
  %v1697 = vsel %vm1686, %v1696, %v527
  %v1698 = vsel %vm1688, %v1697, %v771
  %v1699 = vsel %vm1690, %v1698, %v1084
  %v1700 = vsel %vm1692, %v1699, %v1466
  %1702 = vrot.lane.b32.xlu0 %v790, 120
  %v1703 = vpop.permute.xlu0 %1702
  %1706 = vrot.lane.b32.xlu0 %v1102, 120
  %v1707 = vpop.permute.xlu0 %1706
  %1710 = vrot.lane.b32.xlu0 %v1171, 112
  %v1711 = vpop.permute.xlu0 %1710
  %1714 = vrot.lane.b32.xlu0 %v1484, 120
  %v1715 = vpop.permute.xlu0 %1714
  %1718 = vrot.lane.b32.xlu0 %v1552, 112
  %v1719 = vpop.permute.xlu0 %1718
  %1722 = vrot.lane.b32.xlu0 %v1621, 104
  %v1723 = vpop.permute.xlu0 %1722
  %1726 = vrot.lane.b32.xlu0 %v808, 120
  %v1727 = vpop.permute.xlu0 %1726
  %1730 = vrot.lane.b32.xlu0 %v1120, 120
  %v1731 = vpop.permute.xlu0 %1730
  %1734 = vrot.lane.b32.xlu0 %v1189, 112
  %v1735 = vpop.permute.xlu0 %1734
  %1738 = vrot.lane.b32.xlu0 %v1502, 120
  %v1739 = vpop.permute.xlu0 %1738
  %1742 = vrot.lane.b32.xlu0 %v1570, 112
  %v1743 = vpop.permute.xlu0 %1742
  %1746 = vrot.lane.b32.xlu0 %v1639, 104
  %v1747 = vpop.permute.xlu0 %1746
  %v1749 = vsel %vm1680, %v535, %v779
  %v1750 = vsel %vm1682, %v1749, %v1092
  %v1751 = vsel %vm1684, %v1750, %v1474
  %v1752 = vsel %vm1686, %v1751, %v1703
  %v1753 = vsel %vm1688, %v1752, %v1707
  %v1754 = vsel %vm1690, %v1753, %v1711
  %v1755 = vsel %vm1692, %v1754, %v1715
  %v1756 = vsel %vm1680, %v1719, %v1723
  %v1757 = vsel %vm1682, %v1756, %v1727
  %v1758 = vsel %vm1684, %v1757, %v1731
  %v1759 = vsel %vm1686, %v1758, %v1735
  %v1760 = vsel %vm1688, %v1759, %v1739
  %v1761 = vsel %vm1690, %v1760, %v1743
  %v1762 = vsel %vm1692, %v1761, %v1747
  %1764 = vrot.lane.b32.xlu0 %v1221, 120
  %v1765 = vpop.permute.xlu0 %1764
  %1768 = vrot.lane.b32.xlu0 %v1602, 120
  %v1769 = vpop.permute.xlu0 %1768
  %1772 = vrot.lane.b32.xlu0 %v1671, 112
  %v1773 = vpop.permute.xlu0 %1772
  %1776 = vrot.lane.b32.xlu0 %v1229, 120
  %v1777 = vpop.permute.xlu0 %1776
  %1780 = vrot.lane.b32.xlu0 %v1610, 120
  %v1781 = vpop.permute.xlu0 %1780
  %1784 = vrot.lane.b32.xlu0 %v1679, 112
  %v1785 = vpop.permute.xlu0 %1784
  %v1787 = vsel %vm1680, %v840, %v1152
  %v1788 = vsel %vm1682, %v1787, %v1765
  %v1789 = vsel %vm1684, %v1788, %v1534
  %v1790 = vsel %vm1686, %v1789, %v1769
  %v1791 = vsel %vm1688, %v1790, %v1773
  %v1792 = vsel %vm1690, %v1791, %v848
  %v1793 = vsel %vm1692, %v1792, %v1160
  %v1794 = vsel %vm1680, %v1777, %v1542
  %v1795 = vsel %vm1682, %v1794, %v1781
  %v1796 = vsel %vm1684, %v1795, %v1785
  %1799 = vrot.lane.b32.xlu0 %v1793, 120
  %v1800 = vpop.permute.xlu0 %1799
  %1801 = vrot.lane.b32.xlu0 %v1796, 120
  %v1802 = vpop.permute.xlu0 %1801
  %1805 = vst.msk [vmem:[%s2] sm:$0xff] %vm230, %v1693
  %1806 = vst.msk [vmem:[%s2 + $0x8] sm:$0xff] %vm230, %v1700
  %1807 = vst.msk [vmem:[%s2 + $0x10] sm:$0xff] %vm230, %v1755
  %1808 = vst.msk [vmem:[%s2 + $0x18] sm:$0xff] %vm230, %v1762
  %1809 = vst.msk [vmem:[%s2 + $0x20] sm:$0xff] %vm230, %v1800
  %vm1810 = vcmask 60416
  %1811 = vst.msk [vmem:[%s2 + $0x28] sm:$0xf] %vm1810, %v1802
  // Predicated region
  $region10: #{tpu_custom_call.1} parent=0 // pred_check
    _
  $region11: #{tpu_custom_call.1} parent=0 // pred_check_branch
    %1813 = sbr.rel (0) target = $region13
  $region12: #{tpu_custom_call.1} parent=0 // pred_region
    _
  $region13: #{tpu_custom_call.1} parent=0 // pred_fallthru
    _
  // Predicated region
  $region14: #{tpu_custom_call.1} parent=0 // pred_check
    _
  $region15: #{tpu_custom_call.1} parent=0 // pred_check_branch
    %1815 = sbr.rel (0) target = $region17
  $region16: #{tpu_custom_call.1} parent=0 // pred_region
    _
  $region17: #{tpu_custom_call.1} parent=0 // pred_fallthru
    _

</llo_original>
